<compile_context>
chip_gen: v7x
topology: tpu7x:2x2x1
jax: 0.10.0
libtpu: 0.0.40
codegen_flags: <defaults>
</compile_context>

<pallas_src>
import math

import jax
import jax.numpy as jnp
from jax import lax
from jax.experimental import pallas as pl
from jax.experimental.pallas import tpu as pltpu

D_MODEL = 32
N_HEADS = 4
D_K = D_MODEL // N_HEADS
SCALE = 1.0 / math.sqrt(D_K)


def _num_tensorcores() -> int:
    """Best-effort per-chip TensorCore count (v7x has 2). Falls back to 1."""
    try:
        info = pltpu.get_tpu_info()
    except Exception:
        return 1
    for name in ("num_cores", "core_count", "num_tensorcores", "tensor_core_count"):
        n = getattr(info, name, None)
        if isinstance(n, int) and 1 <= n <= 8:
            return n
    return 1
    # TODO(synk): if detection falls back to 1 on a dual-TC chip, only one core is used.


def mha_kernel(q_ref, k_ref, v_ref, wqkv_ref, bqkv_ref, wo_ref, bo_ref, o_ref):
    Bb, S, _ = q_ref.shape

    # Weights loaded once per grid step (tiny; already bf16 from init-time packing).
    wqkv = wqkv_ref[...]          # (3, D, D) bf16, each slice W.T (out, in)
    bqkv = bqkv_ref[...]          # (3, D, 1) f32
    wo = wo_ref[...]              # (D, D) bf16, (in, out)
    bo = bo_ref[...]              # (1, D) f32

    # Static unroll over the per-step batches (Bb is 1 or 2); each iteration is the
    # proven single-batch path, so the LLO scheduler can interleave the independent
    # MXU pushes of the two batches within the single grid step.
    for b in range(Bb):
        xq = q_ref[b].astype(jnp.bfloat16)       # (S, D)
        xk = k_ref[b].astype(jnp.bfloat16)
        xv = v_ref[b].astype(jnp.bfloat16)

        def proj_t(i, x):
            # (d_model, S) = W.T(out,in) . x(S,in): contract the LAST dims of both
            # operands, so the head split below is a leading-(sublane)-dim reshape.
            acc = lax.dot_general(
                wqkv[i], x, (((1,), (1,)), ((), ())),
                preferred_element_type=jnp.float32)
            return acc + bqkv[i]                 # (D, S) + (D, 1)

        # 1/sqrt(d_k) folded into the Q projection, not the (H, S, S) scores.
        qh = (proj_t(0, xq) * SCALE).reshape(N_HEADS, D_K, S)
        kh = proj_t(1, xk).reshape(N_HEADS, D_K, S)
        vh = proj_t(2, xv).reshape(N_HEADS, D_K, S)

        # scores[h, i, j] = sum_d qh[h, d, i] * kh[h, d, j]  (all heads, one MXU op)
        scores = lax.dot_general(
            qh.astype(jnp.bfloat16), kh.astype(jnp.bfloat16),
            (((1,), (1,)), ((0,), (0,))),
            preferred_element_type=jnp.float32)                 # (H, S, S)

        scores = scores - jnp.max(scores, axis=-1, keepdims=True)
        p = jnp.exp(scores)
        # approx reciprocal lands on the otherwise-idle EUP slot (~1e-3 rel err).
        p = p * pl.reciprocal(jnp.sum(p, axis=-1, keepdims=True), approx=True)
        # TODO(synk): dropout on the attention scores omitted (eval semantics).

        # attn[h, d, i] = sum_j vh[h, d, j] * p[h, i, j]
        attn = lax.dot_general(
            vh.astype(jnp.bfloat16), p.astype(jnp.bfloat16),
            (((2,), (2,)), ((0,), (0,))),
            preferred_element_type=jnp.float32)                 # (H, D_K, S)

        # concat heads: (H, D_K, S) -> (D, S); row h*D_K + d matches torch's
        # transpose(1,2).view(B, S, H*D_K) feature ordering.
        attn2d = attn.reshape(D_MODEL, S).astype(jnp.bfloat16)

        # out[s, o] = sum_d attn2d[d, s] * wo[d, o]
        out = lax.dot_general(
            attn2d, wo, (((0,), (0,)), ((), ())),
            preferred_element_type=jnp.float32)                 # (S, D)
        o_ref[b] = (out + bo).astype(o_ref.dtype)


def pack_mha_params(wq, bq, wk, bk, wv, bv, wo, bo):
    """One-time init-side packing (outside the jitted per-call path).

    Weights arrive in the (in, out) convention used by `x @ W + b`.
    """
    d = wq.shape[0]
    w_qkv = jnp.stack([wq.T, wk.T, wv.T]).astype(jnp.bfloat16)      # (3, D, D) (out,in)
    b_qkv = jnp.stack([bq.reshape(d, 1), bk.reshape(d, 1),
                       bv.reshape(d, 1)]).astype(jnp.float32)       # (3, D, 1)
    wo_b = wo.astype(jnp.bfloat16)                                  # (D, D) (in,out)
    bo_r = bo.reshape(1, d).astype(jnp.float32)                     # (1, D)
    return w_qkv, b_qkv, wo_b, bo_r


@jax.jit
def _mha_pallas(q, k, v, w_qkv, b_qkv, wo, bo):
    B, S, D = q.shape
    assert D == D_MODEL and D % N_HEADS == 0

    # One grid step per TensorCore; fall back to a single step (v5e/v6e layout).
    G = _num_tensorcores()
    if G < 1 or G > B or B % G != 0:
        G = 1
    Bb = B // G

    act_spec = pl.BlockSpec((Bb, S, D), lambda g: (g, 0, 0))

    def full(a):
        return pl.BlockSpec(a.shape, lambda g: (0,) * a.ndim)

    grid_spec = pltpu.PrefetchScalarGridSpec(
        num_scalar_prefetch=0,
        grid=(G,),
        in_specs=[act_spec, act_spec, act_spec,
                  full(w_qkv), full(b_qkv), full(wo), full(bo)],
        out_specs=pl.BlockSpec((Bb, S, D), lambda g: (g, 0, 0)),
    )

    cost = pl.CostEstimate(
        flops=2 * 4 * B * S * D * D + 2 * 2 * B * N_HEADS * S * S * D_K,
        transcendentals=B * N_HEADS * S * S,
        bytes_accessed=(4 * B * S * D) * 4 + (4 * D * D) * 2 + (3 * D + D) * 4,
    )

    return pl.pallas_call(
        mha_kernel,
        out_shape=jax.ShapeDtypeStruct((B, S, D), jnp.float32),
        grid_spec=grid_spec,
        compiler_params=pltpu.CompilerParams(dimension_semantics=("parallel",)),
        cost_estimate=cost,
    )(q, k, v, w_qkv, b_qkv, wo, bo)


def multi_head_attention(q, k, v, mask, packed_params):
    # TODO(synk): mask unsupported; the reference's `if mask:` is a no-op for None.
    assert mask is None
    return _mha_pallas(q, k, v, *packed_params)


# ------------------------- pure-JAX reference -------------------------
def mha_ref(q, k, v, wq, bq, wk, bk, wv, bv, wo, bo):
    B, S, D = q.shape
    query = q @ wq + bq
    key = k @ wk + bk
    value = v @ wv + bv

    def split(t):
        return t.reshape(B, S, N_HEADS, D_K).transpose(0, 2, 1, 3)

    qh, kh, vh = split(query), split(key), split(value)
    scores = jnp.einsum("bhqd,bhkd->bhqk", qh, kh) / math.sqrt(D_K)
    p = jax.nn.softmax(scores, axis=-1)
    a = jnp.einsum("bhqk,bhkd->bhqd", p, vh)
    a = a.transpose(0, 2, 1, 3).reshape(B, S, D)
    return a @ wo + bo


if __name__ == "__main__":
    key = jax.random.PRNGKey(0)
    ks = jax.random.split(key, 12)

    B, S = 2, 8
    q_in = jax.random.normal(ks[0], (B, S, D_MODEL), jnp.float32)
    k_in = jax.random.normal(ks[1], (B, S, D_MODEL), jnp.float32)
    v_in = jax.random.normal(ks[2], (B, S, D_MODEL), jnp.float32)

    def init(k, shape, fan_in):
        bound = 1.0 / (fan_in ** 0.5)
        return jax.random.uniform(k, shape, jnp.float32, -bound, bound)

    # weights stored (in, out); reference computes x @ W + b (== torch with W = W_t.T)
    wq = init(ks[3], (D_MODEL, D_MODEL), D_MODEL)
    bq = init(ks[4], (1, D_MODEL), D_MODEL)
    wk = init(ks[5], (D_MODEL, D_MODEL), D_MODEL)
    bk = init(ks[6], (1, D_MODEL), D_MODEL)
    wv = init(ks[7], (D_MODEL, D_MODEL), D_MODEL)
    bv = init(ks[8], (1, D_MODEL), D_MODEL)
    wo = init(ks[9], (D_MODEL, D_MODEL), D_MODEL)
    bo = init(ks[10], (1, D_MODEL), D_MODEL)

    # One-time init-side packing (transposes / casts / stacking happen here, not per call).
    params = pack_mha_params(wq, bq, wk, bk, wv, bv, wo, bo)

    out = multi_head_attention(q_in, k_in, v_in, None, params)
    out = jax.block_until_ready(out)

    ref = mha_ref(q_in, k_in, v_in, wq, bq, wk, bk, wv, bv, wo, bo)
    assert out.shape == (B, S, D_MODEL)
    err = float(jnp.max(jnp.abs(out - ref)))
    assert jnp.allclose(out, ref, rtol=5e-2, atol=5e-2), err
    print("KERNEL_OK")
</pallas_src>

<mosaic_0001>
module attributes {stable_mosaic.version = 11 : i64} {
  func.func @mha_kernel(%arg0: i32, %arg1: memref<2x8x32xf32, #tpu.memory_space<vmem>>, %arg2: memref<2x8x32xf32, #tpu.memory_space<vmem>>, %arg3: memref<2x8x32xf32, #tpu.memory_space<vmem>>, %arg4: memref<3x32x32xbf16, #tpu.memory_space<vmem>>, %arg5: memref<3x32x1xf32, #tpu.memory_space<vmem>>, %arg6: memref<32x32xbf16, #tpu.memory_space<vmem>>, %arg7: memref<1x32xf32, #tpu.memory_space<vmem>>, %arg8: memref<2x8x32xf32, #tpu.memory_space<vmem>>) attributes {dimension_semantics = [#tpu.dimension_semantics<parallel>], iteration_bounds = array<i64: 1>, scalar_prefetch = 0 : i64, scratch_operands = 0 : i64, tpu.core_type = #tpu.core_type<tc>, window_params = [{transform_indices = @transform_0, window_bounds = array<i64: 2, 8, 32>}, {transform_indices = @transform_1, window_bounds = array<i64: 2, 8, 32>}, {transform_indices = @transform_2, window_bounds = array<i64: 2, 8, 32>}, {pipeline_mode = #tpu.pipeline_mode<synchronous>, transform_indices = @transform_3, window_bounds = array<i64: 3, 32, 32>}, {pipeline_mode = #tpu.pipeline_mode<synchronous>, transform_indices = @transform_4, window_bounds = array<i64: 3, 32, 1>}, {pipeline_mode = #tpu.pipeline_mode<synchronous>, transform_indices = @transform_5, window_bounds = array<i64: 32, 32>}, {pipeline_mode = #tpu.pipeline_mode<synchronous>, transform_indices = @transform_6, window_bounds = array<i64: 1, 32>}, {transform_indices = @transform_7, window_bounds = array<i64: 2, 8, 32>}]} {
    %c0 = arith.constant 0 : index
    %c0_0 = arith.constant 0 : index
    %c0_1 = arith.constant 0 : index
    %0 = vector.load %arg4[%c0, %c0_0, %c0_1] : memref<3x32x32xbf16, #tpu.memory_space<vmem>>, vector<3x32x32xbf16>
    %c0_2 = arith.constant 0 : index
    %c0_3 = arith.constant 0 : index
    %c0_4 = arith.constant 0 : index
    %1 = vector.load %arg5[%c0_2, %c0_3, %c0_4] : memref<3x32x1xf32, #tpu.memory_space<vmem>>, vector<3x32x1xf32>
    %c0_5 = arith.constant 0 : index
    %c0_6 = arith.constant 0 : index
    %2 = vector.load %arg6[%c0_5, %c0_6] : memref<32x32xbf16, #tpu.memory_space<vmem>>, vector<32x32xbf16>
    %c0_7 = arith.constant 0 : index
    %c0_8 = arith.constant 0 : index
    %3 = vector.load %arg7[%c0_7, %c0_8] : memref<1x32xf32, #tpu.memory_space<vmem>>, vector<1x32xf32>
    %c0_9 = arith.constant 0 : index
    %c0_10 = arith.constant 0 : index
    %c0_11 = arith.constant 0 : index
    %4 = vector.load %arg1[%c0_9, %c0_10, %c0_11] : memref<2x8x32xf32, #tpu.memory_space<vmem>>, vector<1x8x32xf32>
    %5 = vector.shape_cast %4 : vector<1x8x32xf32> to vector<8x32xf32>
    %6 = arith.truncf %5 : vector<8x32xf32> to vector<8x32xbf16>
    %c0_12 = arith.constant 0 : index
    %c0_13 = arith.constant 0 : index
    %c0_14 = arith.constant 0 : index
    %7 = vector.load %arg2[%c0_12, %c0_13, %c0_14] : memref<2x8x32xf32, #tpu.memory_space<vmem>>, vector<1x8x32xf32>
    %8 = vector.shape_cast %7 : vector<1x8x32xf32> to vector<8x32xf32>
    %9 = arith.truncf %8 : vector<8x32xf32> to vector<8x32xbf16>
    %c0_15 = arith.constant 0 : index
    %c0_16 = arith.constant 0 : index
    %c0_17 = arith.constant 0 : index
    %10 = vector.load %arg3[%c0_15, %c0_16, %c0_17] : memref<2x8x32xf32, #tpu.memory_space<vmem>>, vector<1x8x32xf32>
    %11 = vector.shape_cast %10 : vector<1x8x32xf32> to vector<8x32xf32>
    %12 = arith.truncf %11 : vector<8x32xf32> to vector<8x32xbf16>
    %13 = vector.extract_strided_slice %0 {offsets = [0, 0, 0], sizes = [1, 32, 32], strides = [1, 1, 1]} : vector<3x32x32xbf16> to vector<1x32x32xbf16>
    %14 = vector.shape_cast %13 : vector<1x32x32xbf16> to vector<32x32xbf16>
    %cst = arith.constant dense<0.000000e+00> : vector<32x8xf32>
    %15 = tpu.matmul %14, %6, %cst {dimension_numbers = #tpu.dot_dimension_numbers<[1], [1], [0], [0], [0, 0, 1, 0], [], []>} : vector<32x32xbf16>, vector<8x32xbf16>, vector<32x8xf32> -> vector<32x8xf32>
    %16 = vector.extract_strided_slice %1 {offsets = [0, 0, 0], sizes = [1, 32, 1], strides = [1, 1, 1]} : vector<3x32x1xf32> to vector<1x32x1xf32>
    %17 = vector.shape_cast %16 : vector<1x32x1xf32> to vector<32x1xf32>
    %18 = vector.broadcast %17 : vector<32x1xf32> to vector<32x8xf32>
    %19 = arith.addf %15, %18 : vector<32x8xf32>
    %cst_18 = arith.constant 0.353553385 : f32
    %20 = vector.broadcast %cst_18 : f32 to vector<32x8xf32>
    %21 = arith.mulf %19, %20 : vector<32x8xf32>
    %22 = vector.shape_cast %21 : vector<32x8xf32> to vector<4x8x8xf32>
    %23 = vector.extract_strided_slice %0 {offsets = [1, 0, 0], sizes = [1, 32, 32], strides = [1, 1, 1]} : vector<3x32x32xbf16> to vector<1x32x32xbf16>
    %24 = vector.shape_cast %23 : vector<1x32x32xbf16> to vector<32x32xbf16>
    %cst_19 = arith.constant dense<0.000000e+00> : vector<32x8xf32>
    %25 = tpu.matmul %24, %9, %cst_19 {dimension_numbers = #tpu.dot_dimension_numbers<[1], [1], [0], [0], [0, 0, 1, 0], [], []>} : vector<32x32xbf16>, vector<8x32xbf16>, vector<32x8xf32> -> vector<32x8xf32>
    %26 = vector.extract_strided_slice %1 {offsets = [1, 0, 0], sizes = [1, 32, 1], strides = [1, 1, 1]} : vector<3x32x1xf32> to vector<1x32x1xf32>
    %27 = vector.shape_cast %26 : vector<1x32x1xf32> to vector<32x1xf32>
    %28 = vector.broadcast %27 : vector<32x1xf32> to vector<32x8xf32>
    %29 = arith.addf %25, %28 : vector<32x8xf32>
    %30 = vector.shape_cast %29 : vector<32x8xf32> to vector<4x8x8xf32>
    %31 = vector.extract_strided_slice %0 {offsets = [2, 0, 0], sizes = [1, 32, 32], strides = [1, 1, 1]} : vector<3x32x32xbf16> to vector<1x32x32xbf16>
    %32 = vector.shape_cast %31 : vector<1x32x32xbf16> to vector<32x32xbf16>
    %cst_20 = arith.constant dense<0.000000e+00> : vector<32x8xf32>
    %33 = tpu.matmul %32, %12, %cst_20 {dimension_numbers = #tpu.dot_dimension_numbers<[1], [1], [0], [0], [0, 0, 1, 0], [], []>} : vector<32x32xbf16>, vector<8x32xbf16>, vector<32x8xf32> -> vector<32x8xf32>
    %34 = vector.extract_strided_slice %1 {offsets = [2, 0, 0], sizes = [1, 32, 1], strides = [1, 1, 1]} : vector<3x32x1xf32> to vector<1x32x1xf32>
    %35 = vector.shape_cast %34 : vector<1x32x1xf32> to vector<32x1xf32>
    %36 = vector.broadcast %35 : vector<32x1xf32> to vector<32x8xf32>
    %37 = arith.addf %33, %36 : vector<32x8xf32>
    %38 = vector.shape_cast %37 : vector<32x8xf32> to vector<4x8x8xf32>
    %39 = arith.truncf %22 : vector<4x8x8xf32> to vector<4x8x8xbf16>
    %40 = arith.truncf %30 : vector<4x8x8xf32> to vector<4x8x8xbf16>
    %cst_21 = arith.constant dense<0.000000e+00> : vector<4x8x8xf32>
    %41 = tpu.matmul %39, %40, %cst_21 {dimension_numbers = #tpu.dot_dimension_numbers<[1], [1], [2], [2], [0, 0, 0, 2, 1, 2], [0], [0]>} : vector<4x8x8xbf16>, vector<4x8x8xbf16>, vector<4x8x8xf32> -> vector<4x8x8xf32>
    %cst_22 = arith.constant dense<0xFF800000> : vector<4x8xf32>
    %42 = vector.multi_reduction <maximumf>, %41, %cst_22 [2] : vector<4x8x8xf32> to vector<4x8xf32>
    %43 = vector.shape_cast %42 : vector<4x8xf32> to vector<4x8x1xf32>
    %44 = vector.broadcast %43 : vector<4x8x1xf32> to vector<4x8x8xf32>
    %45 = arith.subf %41, %44 : vector<4x8x8xf32>
    %46 = math.exp %45 : vector<4x8x8xf32>
    %cst_23 = arith.constant dense<0.000000e+00> : vector<4x8xf32>
    %47 = vector.multi_reduction <add>, %46, %cst_23 [2] : vector<4x8x8xf32> to vector<4x8xf32>
    %48 = vector.shape_cast %47 : vector<4x8xf32> to vector<4x8x1xf32>
    %49 = tpu.reciprocal %48 {approx = true} : vector<4x8x1xf32> -> vector<4x8x1xf32>
    %50 = vector.broadcast %49 : vector<4x8x1xf32> to vector<4x8x8xf32>
    %51 = arith.mulf %46, %50 : vector<4x8x8xf32>
    %52 = arith.truncf %38 : vector<4x8x8xf32> to vector<4x8x8xbf16>
    %53 = arith.truncf %51 : vector<4x8x8xf32> to vector<4x8x8xbf16>
    %cst_24 = arith.constant dense<0.000000e+00> : vector<4x8x8xf32>
    %54 = tpu.matmul %52, %53, %cst_24 {dimension_numbers = #tpu.dot_dimension_numbers<[2], [2], [1], [1], [0, 0, 0, 1, 1, 1], [0], [0]>} : vector<4x8x8xbf16>, vector<4x8x8xbf16>, vector<4x8x8xf32> -> vector<4x8x8xf32>
    %55 = vector.shape_cast %54 : vector<4x8x8xf32> to vector<32x8xf32>
    %56 = arith.truncf %55 : vector<32x8xf32> to vector<32x8xbf16>
    %cst_25 = arith.constant dense<0.000000e+00> : vector<8x32xf32>
    %57 = tpu.matmul %56, %2, %cst_25 {dimension_numbers = #tpu.dot_dimension_numbers<[0], [0], [1], [1], [0, 1, 1, 1], [], []>} : vector<32x8xbf16>, vector<32x32xbf16>, vector<8x32xf32> -> vector<8x32xf32>
    %58 = vector.broadcast %3 : vector<1x32xf32> to vector<8x32xf32>
    %59 = arith.addf %57, %58 : vector<8x32xf32>
    %c0_26 = arith.constant 0 : index
    %c0_27 = arith.constant 0 : index
    %c0_28 = arith.constant 0 : index
    %60 = vector.load %arg8[%c0_26, %c0_27, %c0_28] : memref<2x8x32xf32, #tpu.memory_space<vmem>>, vector<1x8x32xf32>
    %61 = vector.shape_cast %60 : vector<1x8x32xf32> to vector<8x32xf32>
    %62 = vector.shape_cast %59 : vector<8x32xf32> to vector<1x8x32xf32>
    tpu.vector_store %arg8[%c0_26, %c0_27, %c0_28], %62 {strides = array<i32>} : memref<2x8x32xf32, #tpu.memory_space<vmem>>, vector<1x8x32xf32>,
    %c1 = arith.constant 1 : index
    %c0_29 = arith.constant 0 : index
    %c0_30 = arith.constant 0 : index
    %63 = vector.load %arg1[%c1, %c0_29, %c0_30] : memref<2x8x32xf32, #tpu.memory_space<vmem>>, vector<1x8x32xf32>
    %64 = vector.shape_cast %63 : vector<1x8x32xf32> to vector<8x32xf32>
    %65 = arith.truncf %64 : vector<8x32xf32> to vector<8x32xbf16>
    %c1_31 = arith.constant 1 : index
    %c0_32 = arith.constant 0 : index
    %c0_33 = arith.constant 0 : index
    %66 = vector.load %arg2[%c1_31, %c0_32, %c0_33] : memref<2x8x32xf32, #tpu.memory_space<vmem>>, vector<1x8x32xf32>
    %67 = vector.shape_cast %66 : vector<1x8x32xf32> to vector<8x32xf32>
    %68 = arith.truncf %67 : vector<8x32xf32> to vector<8x32xbf16>
    %c1_34 = arith.constant 1 : index
    %c0_35 = arith.constant 0 : index
    %c0_36 = arith.constant 0 : index
    %69 = vector.load %arg3[%c1_34, %c0_35, %c0_36] : memref<2x8x32xf32, #tpu.memory_space<vmem>>, vector<1x8x32xf32>
    %70 = vector.shape_cast %69 : vector<1x8x32xf32> to vector<8x32xf32>
    %71 = arith.truncf %70 : vector<8x32xf32> to vector<8x32xbf16>
    %72 = vector.extract_strided_slice %0 {offsets = [0, 0, 0], sizes = [1, 32, 32], strides = [1, 1, 1]} : vector<3x32x32xbf16> to vector<1x32x32xbf16>
    %73 = vector.shape_cast %72 : vector<1x32x32xbf16> to vector<32x32xbf16>
    %cst_37 = arith.constant dense<0.000000e+00> : vector<32x8xf32>
    %74 = tpu.matmul %73, %65, %cst_37 {dimension_numbers = #tpu.dot_dimension_numbers<[1], [1], [0], [0], [0, 0, 1, 0], [], []>} : vector<32x32xbf16>, vector<8x32xbf16>, vector<32x8xf32> -> vector<32x8xf32>
    %75 = vector.extract_strided_slice %1 {offsets = [0, 0, 0], sizes = [1, 32, 1], strides = [1, 1, 1]} : vector<3x32x1xf32> to vector<1x32x1xf32>
    %76 = vector.shape_cast %75 : vector<1x32x1xf32> to vector<32x1xf32>
    %77 = vector.broadcast %76 : vector<32x1xf32> to vector<32x8xf32>
    %78 = arith.addf %74, %77 : vector<32x8xf32>
    %cst_38 = arith.constant 0.353553385 : f32
    %79 = vector.broadcast %cst_38 : f32 to vector<32x8xf32>
    %80 = arith.mulf %78, %79 : vector<32x8xf32>
    %81 = vector.shape_cast %80 : vector<32x8xf32> to vector<4x8x8xf32>
    %82 = vector.extract_strided_slice %0 {offsets = [1, 0, 0], sizes = [1, 32, 32], strides = [1, 1, 1]} : vector<3x32x32xbf16> to vector<1x32x32xbf16>
    %83 = vector.shape_cast %82 : vector<1x32x32xbf16> to vector<32x32xbf16>
    %cst_39 = arith.constant dense<0.000000e+00> : vector<32x8xf32>
    %84 = tpu.matmul %83, %68, %cst_39 {dimension_numbers = #tpu.dot_dimension_numbers<[1], [1], [0], [0], [0, 0, 1, 0], [], []>} : vector<32x32xbf16>, vector<8x32xbf16>, vector<32x8xf32> -> vector<32x8xf32>
    %85 = vector.extract_strided_slice %1 {offsets = [1, 0, 0], sizes = [1, 32, 1], strides = [1, 1, 1]} : vector<3x32x1xf32> to vector<1x32x1xf32>
    %86 = vector.shape_cast %85 : vector<1x32x1xf32> to vector<32x1xf32>
    %87 = vector.broadcast %86 : vector<32x1xf32> to vector<32x8xf32>
    %88 = arith.addf %84, %87 : vector<32x8xf32>
    %89 = vector.shape_cast %88 : vector<32x8xf32> to vector<4x8x8xf32>
    %90 = vector.extract_strided_slice %0 {offsets = [2, 0, 0], sizes = [1, 32, 32], strides = [1, 1, 1]} : vector<3x32x32xbf16> to vector<1x32x32xbf16>
    %91 = vector.shape_cast %90 : vector<1x32x32xbf16> to vector<32x32xbf16>
    %cst_40 = arith.constant dense<0.000000e+00> : vector<32x8xf32>
    %92 = tpu.matmul %91, %71, %cst_40 {dimension_numbers = #tpu.dot_dimension_numbers<[1], [1], [0], [0], [0, 0, 1, 0], [], []>} : vector<32x32xbf16>, vector<8x32xbf16>, vector<32x8xf32> -> vector<32x8xf32>
    %93 = vector.extract_strided_slice %1 {offsets = [2, 0, 0], sizes = [1, 32, 1], strides = [1, 1, 1]} : vector<3x32x1xf32> to vector<1x32x1xf32>
    %94 = vector.shape_cast %93 : vector<1x32x1xf32> to vector<32x1xf32>
    %95 = vector.broadcast %94 : vector<32x1xf32> to vector<32x8xf32>
    %96 = arith.addf %92, %95 : vector<32x8xf32>
    %97 = vector.shape_cast %96 : vector<32x8xf32> to vector<4x8x8xf32>
    %98 = arith.truncf %81 : vector<4x8x8xf32> to vector<4x8x8xbf16>
    %99 = arith.truncf %89 : vector<4x8x8xf32> to vector<4x8x8xbf16>
    %cst_41 = arith.constant dense<0.000000e+00> : vector<4x8x8xf32>
    %100 = tpu.matmul %98, %99, %cst_41 {dimension_numbers = #tpu.dot_dimension_numbers<[1], [1], [2], [2], [0, 0, 0, 2, 1, 2], [0], [0]>} : vector<4x8x8xbf16>, vector<4x8x8xbf16>, vector<4x8x8xf32> -> vector<4x8x8xf32>
    %cst_42 = arith.constant dense<0xFF800000> : vector<4x8xf32>
    %101 = vector.multi_reduction <maximumf>, %100, %cst_42 [2] : vector<4x8x8xf32> to vector<4x8xf32>
    %102 = vector.shape_cast %101 : vector<4x8xf32> to vector<4x8x1xf32>
    %103 = vector.broadcast %102 : vector<4x8x1xf32> to vector<4x8x8xf32>
    %104 = arith.subf %100, %103 : vector<4x8x8xf32>
    %105 = math.exp %104 : vector<4x8x8xf32>
    %cst_43 = arith.constant dense<0.000000e+00> : vector<4x8xf32>
    %106 = vector.multi_reduction <add>, %105, %cst_43 [2] : vector<4x8x8xf32> to vector<4x8xf32>
    %107 = vector.shape_cast %106 : vector<4x8xf32> to vector<4x8x1xf32>
    %108 = tpu.reciprocal %107 {approx = true} : vector<4x8x1xf32> -> vector<4x8x1xf32>
    %109 = vector.broadcast %108 : vector<4x8x1xf32> to vector<4x8x8xf32>
    %110 = arith.mulf %105, %109 : vector<4x8x8xf32>
    %111 = arith.truncf %97 : vector<4x8x8xf32> to vector<4x8x8xbf16>
    %112 = arith.truncf %110 : vector<4x8x8xf32> to vector<4x8x8xbf16>
    %cst_44 = arith.constant dense<0.000000e+00> : vector<4x8x8xf32>
    %113 = tpu.matmul %111, %112, %cst_44 {dimension_numbers = #tpu.dot_dimension_numbers<[2], [2], [1], [1], [0, 0, 0, 1, 1, 1], [0], [0]>} : vector<4x8x8xbf16>, vector<4x8x8xbf16>, vector<4x8x8xf32> -> vector<4x8x8xf32>
    %114 = vector.shape_cast %113 : vector<4x8x8xf32> to vector<32x8xf32>
    %115 = arith.truncf %114 : vector<32x8xf32> to vector<32x8xbf16>
    %cst_45 = arith.constant dense<0.000000e+00> : vector<8x32xf32>
    %116 = tpu.matmul %115, %2, %cst_45 {dimension_numbers = #tpu.dot_dimension_numbers<[0], [0], [1], [1], [0, 1, 1, 1], [], []>} : vector<32x8xbf16>, vector<32x32xbf16>, vector<8x32xf32> -> vector<8x32xf32>
    %117 = vector.broadcast %3 : vector<1x32xf32> to vector<8x32xf32>
    %118 = arith.addf %116, %117 : vector<8x32xf32>
    %c1_46 = arith.constant 1 : index
    %c0_47 = arith.constant 0 : index
    %c0_48 = arith.constant 0 : index
    %119 = vector.load %arg8[%c1_46, %c0_47, %c0_48] : memref<2x8x32xf32, #tpu.memory_space<vmem>>, vector<1x8x32xf32>
    %120 = vector.shape_cast %119 : vector<1x8x32xf32> to vector<8x32xf32>
    %121 = vector.shape_cast %118 : vector<8x32xf32> to vector<1x8x32xf32>
    tpu.vector_store %arg8[%c1_46, %c0_47, %c0_48], %121 {strides = array<i32>} : memref<2x8x32xf32, #tpu.memory_space<vmem>>, vector<1x8x32xf32>,
    return
  }
  func.func @transform_0(%arg0: i32) -> (i32, i32, i32) {
    %c0_i32 = arith.constant 0 : i32
    %c0_i32_0 = arith.constant 0 : i32
    %c0_i32_1 = arith.constant 0 : i32
    return %arg0, %c0_i32, %c0_i32_0 : i32, i32, i32
  }
  func.func @transform_1(%arg0: i32) -> (i32, i32, i32) {
    %c0_i32 = arith.constant 0 : i32
    %c0_i32_0 = arith.constant 0 : i32
    %c0_i32_1 = arith.constant 0 : i32
    return %arg0, %c0_i32, %c0_i32_0 : i32, i32, i32
  }
  func.func @transform_2(%arg0: i32) -> (i32, i32, i32) {
    %c0_i32 = arith.constant 0 : i32
    %c0_i32_0 = arith.constant 0 : i32
    %c0_i32_1 = arith.constant 0 : i32
    return %arg0, %c0_i32, %c0_i32_0 : i32, i32, i32
  }
  func.func @transform_3(%arg0: i32) -> (i32, i32, i32) {
    %c0_i32 = arith.constant 0 : i32
    %c0_i32_0 = arith.constant 0 : i32
    %c0_i32_1 = arith.constant 0 : i32
    %c0_i32_2 = arith.constant 0 : i32
    return %c0_i32, %c0_i32_0, %c0_i32_1 : i32, i32, i32
  }
  func.func @transform_4(%arg0: i32) -> (i32, i32, i32) {
    %c0_i32 = arith.constant 0 : i32
    %c0_i32_0 = arith.constant 0 : i32
    %c0_i32_1 = arith.constant 0 : i32
    %c0_i32_2 = arith.constant 0 : i32
    return %c0_i32, %c0_i32_0, %c0_i32_1 : i32, i32, i32
  }
  func.func @transform_5(%arg0: i32) -> (i32, i32) {
    %c0_i32 = arith.constant 0 : i32
    %c0_i32_0 = arith.constant 0 : i32
    %c0_i32_1 = arith.constant 0 : i32
    return %c0_i32, %c0_i32_0 : i32, i32
  }
  func.func @transform_6(%arg0: i32) -> (i32, i32) {
    %c0_i32 = arith.constant 0 : i32
    %c0_i32_0 = arith.constant 0 : i32
    %c0_i32_1 = arith.constant 0 : i32
    return %c0_i32, %c0_i32_0 : i32, i32
  }
  func.func @transform_7(%arg0: i32) -> (i32, i32, i32) {
    %c0_i32 = arith.constant 0 : i32
    %c0_i32_0 = arith.constant 0 : i32
    %c0_i32_1 = arith.constant 0 : i32
    return %arg0, %c0_i32, %c0_i32_0 : i32, i32, i32
  }
}

</mosaic_0001>

<llo_original>
// kernel: _mha_pallas.1
$region0: #{_mha_pallas.1}
  #allocation0 [shape = 'u32[]', space=smem, size = 0x4, offset = 0x4, fixed_abs, tag = 'smem constant byte address 0x4 - core index']
  #allocation1 [shape = 'u32[144,128]{1,0:T(1,128)}', space=vmem, size = 0x12000, scoped, tag = 'internal scratch']
  %s0 = inlined_call_operand.vmem [shape: f32[2,8,32], index: 0, kind: input, shape index: {}]
  %s1 = inlined_call_operand.vmem [shape: f32[2,8,32], index: 1, kind: input, shape index: {}]
  %s2 = inlined_call_operand.vmem [shape: f32[2,8,32], index: 2, kind: input, shape index: {}]
  %s3 = inlined_call_operand.vmem [shape: bf16[3,32,32], index: 3, kind: input, shape index: {}]
  %s4 = inlined_call_operand.vmem [shape: f32[3,32,1], index: 4, kind: input, shape index: {}]
  %s5 = inlined_call_operand.vmem [shape: bf16[32,32], index: 5, kind: input, shape index: {}]
  %s6 = inlined_call_operand.vmem [shape: f32[1,32], index: 6, kind: input, shape index: {}]
  %s7 = inlined_call_operand.hbm [shape: f32[2,8,32], index: 7, kind: output, shape index: {}]
  %s8 = sld [smem:[#allocation0]]
  $region38: #{_mha_pallas.1} parent=0
    _
  %s10 = ssub.s32 1, %s8
  %s11 = scalar_select 0, %s10, %s8
  $region1: #{_mha_pallas.1} parent=0
    #allocation2 [shape = 'u8[8192]{0}', space=vmem, size = 0x2000, scoped, tag = 'output window, operand 0, single buffered']
    #allocation3 [shape = 's32[1]{0}', space=sflag, size = 0x4, scoped, tag = 'scoped memory for _mha_pallas.1']
    %12 = vsyncpa [#allocation3], 0
    // Predicated region
    $region2: #{_mha_pallas.1} parent=1 // pred_check
      _
    $region3: #{_mha_pallas.1} parent=1 // pred_check_branch
      %14 = sbr.rel (0) target = $region5
    $region4: #{_mha_pallas.1} parent=1 // pred_region
      _
    $region5: #{_mha_pallas.1} parent=1 // pred_fallthru
      _
    // Predicated region
    $region6: #{_mha_pallas.1} parent=1 // pred_check
      _
    $region7: #{_mha_pallas.1} parent=1 // pred_check_branch
      %16 = sbr.rel (0) target = $region9
    $region8: #{_mha_pallas.1} parent=1 // pred_region
      _
    $region9: #{_mha_pallas.1} parent=1 // pred_fallthru
      _
    // Predicated region
    $region10: #{_mha_pallas.1} parent=1 // pred_check
      _
    $region11: #{_mha_pallas.1} parent=1 // pred_check_branch
      %18 = sbr.rel (0) target = $region13
    $region12: #{_mha_pallas.1} parent=1 // pred_region
      _
    $region13: #{_mha_pallas.1} parent=1 // pred_fallthru
      _
    // Predicated region
    $region14: #{_mha_pallas.1} parent=1 // pred_check
      _
    $region15: #{_mha_pallas.1} parent=1 // pred_check_branch
      %20 = sbr.rel (0) target = $region17
    $region16: #{_mha_pallas.1} parent=1 // pred_region
      _
    $region17: #{_mha_pallas.1} parent=1 // pred_fallthru
      _
    // Predicated region
    $region18: #{_mha_pallas.1} parent=1 // pred_check
      _
    $region19: #{_mha_pallas.1} parent=1 // pred_check_branch
      %22 = sbr.rel (0) target = $region21
    $region20: #{_mha_pallas.1} parent=1 // pred_region
      _
    $region21: #{_mha_pallas.1} parent=1 // pred_fallthru
      _
    // Predicated region
    $region22: #{_mha_pallas.1} parent=1 // pred_check
      _
    $region23: #{_mha_pallas.1} parent=1 // pred_check_branch
      %24 = sbr.rel (0) target = $region25
    $region24: #{_mha_pallas.1} parent=1 // pred_region
      _
    $region25: #{_mha_pallas.1} parent=1 // pred_fallthru
      _
    // Predicated region
    $region26: #{_mha_pallas.1} parent=1 // pred_check
      _
    $region27: #{_mha_pallas.1} parent=1 // pred_check_branch
      %26 = sbr.rel (0) target = $region29
    $region28: #{_mha_pallas.1} parent=1 // pred_region
      _
    $region29: #{_mha_pallas.1} parent=1 // pred_fallthru
      _
    %v28 = vld [vmem:[%s3] sm:$0xf]
    %v29 = vld [vmem:[%s3 + $0x4] sm:$0xf]
    %v30 = vld [vmem:[%s3 + $0x8] sm:$0xf]
    %v31 = vld [vmem:[%s3 + $0xc] sm:$0xf]
    %v32 = vld [vmem:[%s3 + $0x10] sm:$0xf]
    %v33 = vld [vmem:[%s3 + $0x14] sm:$0xf]
    %v34 = vld [vmem:[%s3 + $0x18] sm:$0xf]
    %v35 = vld [vmem:[%s3 + $0x1c] sm:$0xf]
    %v36 = vld [vmem:[%s3 + $0x20] sm:$0xf]
    %v37 = vld [vmem:[%s3 + $0x24] sm:$0xf]
    %v38 = vld [vmem:[%s3 + $0x28] sm:$0xf]
    %v39 = vld [vmem:[%s3 + $0x2c] sm:$0xf]
    %v40 = vld [vmem:[%s4] sm:$0xff]
    %v41 = vld [vmem:[%s4 + $0x8] sm:$0xff]
    %v42 = vld [vmem:[%s4 + $0x10] sm:$0xff]
    %v43 = vld [vmem:[%s4 + $0x18] sm:$0xff]
    %v44 = vld [vmem:[%s4 + $0x20] sm:$0xff]
    %v45 = vld [vmem:[%s4 + $0x28] sm:$0xff]
    %v46 = vld [vmem:[%s4 + $0x30] sm:$0xff]
    %v47 = vld [vmem:[%s4 + $0x38] sm:$0xff]
    %v48 = vld [vmem:[%s4 + $0x40] sm:$0xff]
    %v49 = vld [vmem:[%s4 + $0x48] sm:$0xff]
    %v50 = vld [vmem:[%s4 + $0x50] sm:$0xff]
    %v51 = vld [vmem:[%s4 + $0x58] sm:$0xff]
    %v52 = vld [vmem:[%s5] sm:$0xf]
    %v53 = vld [vmem:[%s5 + $0x4] sm:$0xf]
    %v54 = vld [vmem:[%s5 + $0x8] sm:$0xf]
    %v55 = vld [vmem:[%s5 + $0xc] sm:$0xf]
    %v56 = vld [vmem:[%s6] sm:$0x1]
    %v57 = vld [vmem:[%s0] sm:$0xff]
    %v58 = vpack.c.bf16 %v57, %v57
    %v59 = vld [vmem:[%s1] sm:$0xff]
    %v60 = vpack.c.bf16 %v59, %v59
    %v61 = vld [vmem:[%s2] sm:$0xff]
    %v62 = vpack.c.bf16 %v61, %v61
    %64 = vset.pattern.permute.xlu0 0
    %65 = vperm.xlu0 %64, %v40
    %v66 = vpop.permute.xlu0 %65
    %69 = vset.pattern.permute.xlu0 0
    %70 = vperm.xlu0 %69, %v41
    %v71 = vpop.permute.xlu0 %70
    %74 = vset.pattern.permute.xlu0 0
    %75 = vperm.xlu0 %74, %v42
    %v76 = vpop.permute.xlu0 %75
    %79 = vset.pattern.permute.xlu0 0
    %80 = vperm.xlu0 %79, %v43
    %v81 = vpop.permute.xlu0 %80
    %v87 = vunpack.c.l.b16 %v28
    %v88 = vunpack.c.l.b16 %v29
    %v89 = vunpack.c.l.b16 %v30
    %v90 = vunpack.c.l.b16 %v31
    %v91 = vpack.c.b16 %v88, %v87
    %v92 = vpack.c.b16 %v90, %v89
    %vm93 = vcmask 261120
    %v95 = vsel %vm93, %v91, 0
    %v98 = vsel %vm93, %v92, 0
    %v101 = vsel %vm93, %v58, 0
    %103 = vmatprep.subr.bf16.mxu0 0
    %104 = vmatpush1.bf16.xpose.msra.mxu0 %v101
    %105 = vmatprep.subr.bf16.mxu0 0
    %106 = vmatpush1.bf16.xpose.msra.mxu0 0
    %107 = vmatprep.subr.bf16.mxu0 0
    %108 = vmatpush1.bf16.xpose.msra.mxu0 0
    %109 = vmatprep.subr.bf16.mxu0 0
    %110 = vmatpush1.bf16.xpose.msra.mxu0 0
    %111 = vmatprep.subr.bf16.mxu0 0
    %112 = vmatpush1.bf16.xpose.msra.mxu0 0
    %113 = vmatprep.subr.bf16.mxu0 0
    %114 = vmatpush1.bf16.xpose.msra.mxu0 0
    %115 = vmatprep.subr.bf16.mxu0 0
    %116 = vmatpush1.bf16.xpose.msra.mxu0 0
    %117 = vmatprep.subr.bf16.mxu0 0
    %118 = vmatpush1.bf16.xpose.msra.mxu0 0
    %119 = vmatprep.subr.bf16.mxu0 0
    %120 = vmatpush1.bf16.xpose.msra.mxu0 0
    %121 = vmatprep.subr.bf16.mxu0 0
    %122 = vmatpush1.bf16.xpose.msra.mxu0 0
    %123 = vmatprep.subr.bf16.mxu0 0
    %124 = vmatpush1.bf16.xpose.msra.mxu0 0
    %125 = vmatprep.subr.bf16.mxu0 0
    %126 = vmatpush1.bf16.xpose.msra.mxu0 0
    %127 = vmatprep.subr.bf16.mxu0 0
    %128 = vmatpush1.bf16.xpose.msra.mxu0 0
    %129 = vmatprep.subr.bf16.mxu0 0
    %130 = vmatpush1.bf16.xpose.msra.mxu0 0
    %131 = vmatprep.subr.bf16.mxu0 0
    %132 = vmatpush1.bf16.xpose.msra.mxu0 0
    %133 = vmatprep.subr.bf16.mxu0 0
    %134 = vmatpush1.bf16.xpose.msra.mxu0 0
    %135 = vmatprep.mubr.bf16.mxu0 0
    %136 = vmatmul.mubr.bf16.gmra.mrb[0].mxu0 %v95
    %v137 = vpop.f32.mrb[0].mxu0
    %v138 = vadd.f32 %v66, %v137
    %v139 = vpop.f32.mrb[0].mxu0
    %v140 = vpop.f32.mrb[0].mxu0
    %v141 = vadd.f32 %v71, %v140
    %v142 = vpop.f32.mrb[0].mxu0
    %143 = vmatprep.mubr.bf16.mxu0 0
    %144 = vmatmul.mubr.bf16.gmra.mrb[0].mxu0 %v98
    %v145 = vpop.f32.mrb[0].mxu0
    %v146 = vadd.f32 %v76, %v145
    %v147 = vpop.f32.mrb[0].mxu0
    %v148 = vpop.f32.mrb[0].mxu0
    %v149 = vadd.f32 %v81, %v148
    %v150 = vpop.f32.mrb[0].mxu0
    %151 = vdwg.mxu0
    %v152 = vmul.f32 %v138, 0.35355338
    %v153 = vmul.f32 %v141, 0.35355338
    %v154 = vmul.f32 %v146, 0.35355338
    %v155 = vmul.f32 %v149, 0.35355338
    %157 = vset.pattern.permute.xlu0 0
    %158 = vperm.xlu0 %157, %v44
    %v159 = vpop.permute.xlu0 %158
    %162 = vset.pattern.permute.xlu0 0
    %163 = vperm.xlu0 %162, %v45
    %v164 = vpop.permute.xlu0 %163
    %167 = vset.pattern.permute.xlu0 0
    %168 = vperm.xlu0 %167, %v46
    %v169 = vpop.permute.xlu0 %168
    %172 = vset.pattern.permute.xlu0 0
    %173 = vperm.xlu0 %172, %v47
    %v174 = vpop.permute.xlu0 %173
    %v180 = vunpack.c.l.b16 %v32
    %v181 = vunpack.c.l.b16 %v33
    %v182 = vunpack.c.l.b16 %v34
    %v183 = vunpack.c.l.b16 %v35
    %v184 = vpack.c.b16 %v181, %v180
    %v185 = vpack.c.b16 %v183, %v182
    %v187 = vsel %vm93, %v184, 0
    %v190 = vsel %vm93, %v185, 0
    %v193 = vsel %vm93, %v60, 0
    %195 = vmatprep.subr.bf16.mxu0 0
    %196 = vmatpush1.bf16.xpose.msra.mxu0 %v193
    %197 = vmatprep.subr.bf16.mxu0 0
    %198 = vmatpush1.bf16.xpose.msra.mxu0 0
    %199 = vmatprep.subr.bf16.mxu0 0
    %200 = vmatpush1.bf16.xpose.msra.mxu0 0
    %201 = vmatprep.subr.bf16.mxu0 0
    %202 = vmatpush1.bf16.xpose.msra.mxu0 0
    %203 = vmatprep.subr.bf16.mxu0 0
    %204 = vmatpush1.bf16.xpose.msra.mxu0 0
    %205 = vmatprep.subr.bf16.mxu0 0
    %206 = vmatpush1.bf16.xpose.msra.mxu0 0
    %207 = vmatprep.subr.bf16.mxu0 0
    %208 = vmatpush1.bf16.xpose.msra.mxu0 0
    %209 = vmatprep.subr.bf16.mxu0 0
    %210 = vmatpush1.bf16.xpose.msra.mxu0 0
    %211 = vmatprep.subr.bf16.mxu0 0
    %212 = vmatpush1.bf16.xpose.msra.mxu0 0
    %213 = vmatprep.subr.bf16.mxu0 0
    %214 = vmatpush1.bf16.xpose.msra.mxu0 0
    %215 = vmatprep.subr.bf16.mxu0 0
    %216 = vmatpush1.bf16.xpose.msra.mxu0 0
    %217 = vmatprep.subr.bf16.mxu0 0
    %218 = vmatpush1.bf16.xpose.msra.mxu0 0
    %219 = vmatprep.subr.bf16.mxu0 0
    %220 = vmatpush1.bf16.xpose.msra.mxu0 0
    %221 = vmatprep.subr.bf16.mxu0 0
    %222 = vmatpush1.bf16.xpose.msra.mxu0 0
    %223 = vmatprep.subr.bf16.mxu0 0
    %224 = vmatpush1.bf16.xpose.msra.mxu0 0
    %225 = vmatprep.subr.bf16.mxu0 0
    %226 = vmatpush1.bf16.xpose.msra.mxu0 0
    %227 = vmatprep.mubr.bf16.mxu0 0
    %228 = vmatmul.mubr.bf16.gmra.mrb[0].mxu0 %v187
    %v229 = vpop.f32.mrb[0].mxu0
    %v230 = vadd.f32 %v159, %v229
    %v231 = vpop.f32.mrb[0].mxu0
    %v232 = vpop.f32.mrb[0].mxu0
    %v233 = vadd.f32 %v164, %v232
    %v234 = vpop.f32.mrb[0].mxu0
    %235 = vmatprep.mubr.bf16.mxu0 0
    %236 = vmatmul.mubr.bf16.gmra.mrb[0].mxu0 %v190
    %v237 = vpop.f32.mrb[0].mxu0
    %v238 = vadd.f32 %v169, %v237
    %v239 = vpop.f32.mrb[0].mxu0
    %v240 = vpop.f32.mrb[0].mxu0
    %v241 = vadd.f32 %v174, %v240
    %v242 = vpop.f32.mrb[0].mxu0
    %243 = vdwg.mxu0
    %245 = vset.pattern.permute.xlu0 0
    %246 = vperm.xlu0 %245, %v48
    %v247 = vpop.permute.xlu0 %246
    %250 = vset.pattern.permute.xlu0 0
    %251 = vperm.xlu0 %250, %v49
    %v252 = vpop.permute.xlu0 %251
    %255 = vset.pattern.permute.xlu0 0
    %256 = vperm.xlu0 %255, %v50
    %v257 = vpop.permute.xlu0 %256
    %260 = vset.pattern.permute.xlu0 0
    %261 = vperm.xlu0 %260, %v51
    %v262 = vpop.permute.xlu0 %261
    %v268 = vunpack.c.l.b16 %v36
    %v269 = vunpack.c.l.b16 %v37
    %v270 = vunpack.c.l.b16 %v38
    %v271 = vunpack.c.l.b16 %v39
    %v272 = vpack.c.b16 %v269, %v268
    %v273 = vpack.c.b16 %v271, %v270
    %v275 = vsel %vm93, %v272, 0
    %v278 = vsel %vm93, %v273, 0
    %v281 = vsel %vm93, %v62, 0
    %283 = vmatprep.subr.bf16.mxu0 0
    %284 = vmatpush1.bf16.xpose.msra.mxu0 %v281
    %285 = vmatprep.subr.bf16.mxu0 0
    %286 = vmatpush1.bf16.xpose.msra.mxu0 0
    %287 = vmatprep.subr.bf16.mxu0 0
    %288 = vmatpush1.bf16.xpose.msra.mxu0 0
    %289 = vmatprep.subr.bf16.mxu0 0
    %290 = vmatpush1.bf16.xpose.msra.mxu0 0
    %291 = vmatprep.subr.bf16.mxu0 0
    %292 = vmatpush1.bf16.xpose.msra.mxu0 0
    %293 = vmatprep.subr.bf16.mxu0 0
    %294 = vmatpush1.bf16.xpose.msra.mxu0 0
    %295 = vmatprep.subr.bf16.mxu0 0
    %296 = vmatpush1.bf16.xpose.msra.mxu0 0
    %297 = vmatprep.subr.bf16.mxu0 0
    %298 = vmatpush1.bf16.xpose.msra.mxu0 0
    %299 = vmatprep.subr.bf16.mxu0 0
    %300 = vmatpush1.bf16.xpose.msra.mxu0 0
    %301 = vmatprep.subr.bf16.mxu0 0
    %302 = vmatpush1.bf16.xpose.msra.mxu0 0
    %303 = vmatprep.subr.bf16.mxu0 0
    %304 = vmatpush1.bf16.xpose.msra.mxu0 0
    %305 = vmatprep.subr.bf16.mxu0 0
    %306 = vmatpush1.bf16.xpose.msra.mxu0 0
    %307 = vmatprep.subr.bf16.mxu0 0
    %308 = vmatpush1.bf16.xpose.msra.mxu0 0
    %309 = vmatprep.subr.bf16.mxu0 0
    %310 = vmatpush1.bf16.xpose.msra.mxu0 0
    %311 = vmatprep.subr.bf16.mxu0 0
    %312 = vmatpush1.bf16.xpose.msra.mxu0 0
    %313 = vmatprep.subr.bf16.mxu0 0
    %314 = vmatpush1.bf16.xpose.msra.mxu0 0
    %315 = vmatprep.mubr.bf16.mxu0 0
    %316 = vmatmul.mubr.bf16.gmra.mrb[0].mxu0 %v275
    %v317 = vpop.f32.mrb[0].mxu0
    %v318 = vadd.f32 %v247, %v317
    %v319 = vpop.f32.mrb[0].mxu0
    %v320 = vpop.f32.mrb[0].mxu0
    %v321 = vadd.f32 %v252, %v320
    %v322 = vpop.f32.mrb[0].mxu0
    %323 = vmatprep.mubr.bf16.mxu0 0
    %324 = vmatmul.mubr.bf16.gmra.mrb[0].mxu0 %v278
    %v325 = vpop.f32.mrb[0].mxu0
    %v326 = vadd.f32 %v257, %v325
    %v327 = vpop.f32.mrb[0].mxu0
    %v328 = vpop.f32.mrb[0].mxu0
    %v329 = vadd.f32 %v262, %v328
    %v330 = vpop.f32.mrb[0].mxu0
    %331 = vdwg.mxu0
    %v332 = vpack.c.bf16 %v152, %v152
    %v333 = vpack.c.bf16 %v153, %v153
    %v334 = vpack.c.bf16 %v154, %v154
    %v335 = vpack.c.bf16 %v155, %v155
    %v336 = vpack.c.bf16 %v230, %v230
    %v337 = vpack.c.bf16 %v233, %v233
    %v338 = vpack.c.bf16 %v238, %v238
    %v339 = vpack.c.bf16 %v241, %v241
    %340 = vxpose.xlu0.c.b16.start [1/8] %v332, 128
    %341 = vxpose.xlu0.c.b16.cont [2/8] 0, 128
    %342 = vxpose.xlu0.c.b16.cont [3/8] 0, 128
    %343 = vxpose.xlu0.c.b16.cont [4/8] 0, 128
    %344 = vxpose.xlu0.c.b16.cont [5/8] 0, 128
    %345 = vxpose.xlu0.c.b16.cont [6/8] 0, 128
    %346 = vxpose.xlu0.c.b16.cont [7/8] 0, 128
    %347 = vxpose.xlu0.c.b16.end [8/8] 0, 128
    %v348 = vpop.trf.xlu0
    %v349 = vpop.trf.xlu0
    %v350 = vpop.trf.xlu0
    %v351 = vpop.trf.xlu0
    %v352 = vpop.trf.xlu0
    %v353 = vpop.trf.xlu0
    %v354 = vpop.trf.xlu0
    %v355 = vpop.trf.xlu0
    %vm356 = vcmask 64512
    %v358 = vsel %vm356, %v348, 0
    %vm360 = vcmask 1043456
    %v362 = vsel %vm360, %v336, 0
    %364 = vmatprep.subr.bf16.mxu0 0
    %365 = vmatpush1.bf16.msra.mxu0 %v362
    %366 = vmatprep.subr.bf16.mxu0 0
    %367 = vmatpush1.bf16.msra.mxu0 0
    %368 = vmatprep.subr.bf16.mxu0 0
    %369 = vmatpush1.bf16.msra.mxu0 0
    %370 = vmatprep.subr.bf16.mxu0 0
    %371 = vmatpush1.bf16.msra.mxu0 0
    %372 = vmatprep.subr.bf16.mxu0 0
    %373 = vmatpush1.bf16.msra.mxu0 0
    %374 = vmatprep.subr.bf16.mxu0 0
    %375 = vmatpush1.bf16.msra.mxu0 0
    %376 = vmatprep.subr.bf16.mxu0 0
    %377 = vmatpush1.bf16.msra.mxu0 0
    %378 = vmatprep.subr.bf16.mxu0 0
    %379 = vmatpush1.bf16.msra.mxu0 0
    %380 = vmatprep.subr.bf16.mxu0 0
    %381 = vmatpush1.bf16.msra.mxu0 0
    %382 = vmatprep.subr.bf16.mxu0 0
    %383 = vmatpush1.bf16.msra.mxu0 0
    %384 = vmatprep.subr.bf16.mxu0 0
    %385 = vmatpush1.bf16.msra.mxu0 0
    %386 = vmatprep.subr.bf16.mxu0 0
    %387 = vmatpush1.bf16.msra.mxu0 0
    %388 = vmatprep.subr.bf16.mxu0 0
    %389 = vmatpush1.bf16.msra.mxu0 0
    %390 = vmatprep.subr.bf16.mxu0 0
    %391 = vmatpush1.bf16.msra.mxu0 0
    %392 = vmatprep.subr.bf16.mxu0 0
    %393 = vmatpush1.bf16.msra.mxu0 0
    %394 = vmatprep.subr.bf16.mxu0 0
    %395 = vmatpush1.bf16.msra.mxu0 0
    %396 = vmatprep.mubr.bf16.mxu0 0
    %397 = vmatmul.mubr.bf16.gmra.mrb[0].mxu0 %v358
    %v398 = vpop.f32.mrb[0].mxu0
    %v399 = vadd.f32 0.0, %v398
    %v400 = vpop.f32.mrb[0].mxu0
    %v401 = vpop.f32.mrb[0].mxu0
    %v402 = vpop.f32.mrb[0].mxu0
    %403 = vdwg.mxu0
    %404 = vxpose.xlu0.c.b16.start [1/8] %v333, 128
    %405 = vxpose.xlu0.c.b16.cont [2/8] 0, 128
    %406 = vxpose.xlu0.c.b16.cont [3/8] 0, 128
    %407 = vxpose.xlu0.c.b16.cont [4/8] 0, 128
    %408 = vxpose.xlu0.c.b16.cont [5/8] 0, 128
    %409 = vxpose.xlu0.c.b16.cont [6/8] 0, 128
    %410 = vxpose.xlu0.c.b16.cont [7/8] 0, 128
    %411 = vxpose.xlu0.c.b16.end [8/8] 0, 128
    %v412 = vpop.trf.xlu0
    %v413 = vpop.trf.xlu0
    %v414 = vpop.trf.xlu0
    %v415 = vpop.trf.xlu0
    %v416 = vpop.trf.xlu0
    %v417 = vpop.trf.xlu0
    %v418 = vpop.trf.xlu0
    %v419 = vpop.trf.xlu0
    %v421 = vsel %vm356, %v412, 0
    %v424 = vsel %vm360, %v337, 0
    %426 = vmatprep.subr.bf16.mxu0 0
    %427 = vmatpush1.bf16.msra.mxu0 %v424
    %428 = vmatprep.subr.bf16.mxu0 0
    %429 = vmatpush1.bf16.msra.mxu0 0
    %430 = vmatprep.subr.bf16.mxu0 0
    %431 = vmatpush1.bf16.msra.mxu0 0
    %432 = vmatprep.subr.bf16.mxu0 0
    %433 = vmatpush1.bf16.msra.mxu0 0
    %434 = vmatprep.subr.bf16.mxu0 0
    %435 = vmatpush1.bf16.msra.mxu0 0
    %436 = vmatprep.subr.bf16.mxu0 0
    %437 = vmatpush1.bf16.msra.mxu0 0
    %438 = vmatprep.subr.bf16.mxu0 0
    %439 = vmatpush1.bf16.msra.mxu0 0
    %440 = vmatprep.subr.bf16.mxu0 0
    %441 = vmatpush1.bf16.msra.mxu0 0
    %442 = vmatprep.subr.bf16.mxu0 0
    %443 = vmatpush1.bf16.msra.mxu0 0
    %444 = vmatprep.subr.bf16.mxu0 0
    %445 = vmatpush1.bf16.msra.mxu0 0
    %446 = vmatprep.subr.bf16.mxu0 0
    %447 = vmatpush1.bf16.msra.mxu0 0
    %448 = vmatprep.subr.bf16.mxu0 0
    %449 = vmatpush1.bf16.msra.mxu0 0
    %450 = vmatprep.subr.bf16.mxu0 0
    %451 = vmatpush1.bf16.msra.mxu0 0
    %452 = vmatprep.subr.bf16.mxu0 0
    %453 = vmatpush1.bf16.msra.mxu0 0
    %454 = vmatprep.subr.bf16.mxu0 0
    %455 = vmatpush1.bf16.msra.mxu0 0
    %456 = vmatprep.subr.bf16.mxu0 0
    %457 = vmatpush1.bf16.msra.mxu0 0
    %458 = vmatprep.mubr.bf16.mxu0 0
    %459 = vmatmul.mubr.bf16.gmra.mrb[0].mxu0 %v421
    %v460 = vpop.f32.mrb[0].mxu0
    %v461 = vadd.f32 0.0, %v460
    %v462 = vpop.f32.mrb[0].mxu0
    %v463 = vpop.f32.mrb[0].mxu0
    %v464 = vpop.f32.mrb[0].mxu0
    %465 = vdwg.mxu0
    %466 = vxpose.xlu0.c.b16.start [1/8] %v334, 128
    %467 = vxpose.xlu0.c.b16.cont [2/8] 0, 128
    %468 = vxpose.xlu0.c.b16.cont [3/8] 0, 128
    %469 = vxpose.xlu0.c.b16.cont [4/8] 0, 128
    %470 = vxpose.xlu0.c.b16.cont [5/8] 0, 128
    %471 = vxpose.xlu0.c.b16.cont [6/8] 0, 128
    %472 = vxpose.xlu0.c.b16.cont [7/8] 0, 128
    %473 = vxpose.xlu0.c.b16.end [8/8] 0, 128
    %v474 = vpop.trf.xlu0
    %v475 = vpop.trf.xlu0
    %v476 = vpop.trf.xlu0
    %v477 = vpop.trf.xlu0
    %v478 = vpop.trf.xlu0
    %v479 = vpop.trf.xlu0
    %v480 = vpop.trf.xlu0
    %v481 = vpop.trf.xlu0
    %v483 = vsel %vm356, %v474, 0
    %v486 = vsel %vm360, %v338, 0
    %488 = vmatprep.subr.bf16.mxu0 0
    %489 = vmatpush1.bf16.msra.mxu0 %v486
    %490 = vmatprep.subr.bf16.mxu0 0
    %491 = vmatpush1.bf16.msra.mxu0 0
    %492 = vmatprep.subr.bf16.mxu0 0
    %493 = vmatpush1.bf16.msra.mxu0 0
    %494 = vmatprep.subr.bf16.mxu0 0
    %495 = vmatpush1.bf16.msra.mxu0 0
    %496 = vmatprep.subr.bf16.mxu0 0
    %497 = vmatpush1.bf16.msra.mxu0 0
    %498 = vmatprep.subr.bf16.mxu0 0
    %499 = vmatpush1.bf16.msra.mxu0 0
    %500 = vmatprep.subr.bf16.mxu0 0
    %501 = vmatpush1.bf16.msra.mxu0 0
    %502 = vmatprep.subr.bf16.mxu0 0
    %503 = vmatpush1.bf16.msra.mxu0 0
    %504 = vmatprep.subr.bf16.mxu0 0
    %505 = vmatpush1.bf16.msra.mxu0 0
    %506 = vmatprep.subr.bf16.mxu0 0
    %507 = vmatpush1.bf16.msra.mxu0 0
    %508 = vmatprep.subr.bf16.mxu0 0
    %509 = vmatpush1.bf16.msra.mxu0 0
    %510 = vmatprep.subr.bf16.mxu0 0
    %511 = vmatpush1.bf16.msra.mxu0 0
    %512 = vmatprep.subr.bf16.mxu0 0
    %513 = vmatpush1.bf16.msra.mxu0 0
    %514 = vmatprep.subr.bf16.mxu0 0
    %515 = vmatpush1.bf16.msra.mxu0 0
    %516 = vmatprep.subr.bf16.mxu0 0
    %517 = vmatpush1.bf16.msra.mxu0 0
    %518 = vmatprep.subr.bf16.mxu0 0
    %519 = vmatpush1.bf16.msra.mxu0 0
    %520 = vmatprep.mubr.bf16.mxu0 0
    %521 = vmatmul.mubr.bf16.gmra.mrb[0].mxu0 %v483
    %v522 = vpop.f32.mrb[0].mxu0
    %v523 = vadd.f32 0.0, %v522
    %v524 = vpop.f32.mrb[0].mxu0
    %v525 = vpop.f32.mrb[0].mxu0
    %v526 = vpop.f32.mrb[0].mxu0
    %527 = vdwg.mxu0
    %528 = vxpose.xlu0.c.b16.start [1/8] %v335, 128
    %529 = vxpose.xlu0.c.b16.cont [2/8] 0, 128
    %530 = vxpose.xlu0.c.b16.cont [3/8] 0, 128
    %531 = vxpose.xlu0.c.b16.cont [4/8] 0, 128
    %532 = vxpose.xlu0.c.b16.cont [5/8] 0, 128
    %533 = vxpose.xlu0.c.b16.cont [6/8] 0, 128
    %534 = vxpose.xlu0.c.b16.cont [7/8] 0, 128
    %535 = vxpose.xlu0.c.b16.end [8/8] 0, 128
    %v536 = vpop.trf.xlu0
    %v537 = vpop.trf.xlu0
    %v538 = vpop.trf.xlu0
    %v539 = vpop.trf.xlu0
    %v540 = vpop.trf.xlu0
    %v541 = vpop.trf.xlu0
    %v542 = vpop.trf.xlu0
    %v543 = vpop.trf.xlu0
    %v545 = vsel %vm356, %v536, 0
    %v548 = vsel %vm360, %v339, 0
    %550 = vmatprep.subr.bf16.mxu0 0
    %551 = vmatpush1.bf16.msra.mxu0 %v548
    %552 = vmatprep.subr.bf16.mxu0 0
    %553 = vmatpush1.bf16.msra.mxu0 0
    %554 = vmatprep.subr.bf16.mxu0 0
    %555 = vmatpush1.bf16.msra.mxu0 0
    %556 = vmatprep.subr.bf16.mxu0 0
    %557 = vmatpush1.bf16.msra.mxu0 0
    %558 = vmatprep.subr.bf16.mxu0 0
    %559 = vmatpush1.bf16.msra.mxu0 0
    %560 = vmatprep.subr.bf16.mxu0 0
    %561 = vmatpush1.bf16.msra.mxu0 0
    %562 = vmatprep.subr.bf16.mxu0 0
    %563 = vmatpush1.bf16.msra.mxu0 0
    %564 = vmatprep.subr.bf16.mxu0 0
    %565 = vmatpush1.bf16.msra.mxu0 0
    %566 = vmatprep.subr.bf16.mxu0 0
    %567 = vmatpush1.bf16.msra.mxu0 0
    %568 = vmatprep.subr.bf16.mxu0 0
    %569 = vmatpush1.bf16.msra.mxu0 0
    %570 = vmatprep.subr.bf16.mxu0 0
    %571 = vmatpush1.bf16.msra.mxu0 0
    %572 = vmatprep.subr.bf16.mxu0 0
    %573 = vmatpush1.bf16.msra.mxu0 0
    %574 = vmatprep.subr.bf16.mxu0 0
    %575 = vmatpush1.bf16.msra.mxu0 0
    %576 = vmatprep.subr.bf16.mxu0 0
    %577 = vmatpush1.bf16.msra.mxu0 0
    %578 = vmatprep.subr.bf16.mxu0 0
    %579 = vmatpush1.bf16.msra.mxu0 0
    %580 = vmatprep.subr.bf16.mxu0 0
    %581 = vmatpush1.bf16.msra.mxu0 0
    %582 = vmatprep.mubr.bf16.mxu0 0
    %583 = vmatmul.mubr.bf16.gmra.mrb[0].mxu0 %v545
    %v584 = vpop.f32.mrb[0].mxu0
    %v585 = vadd.f32 0.0, %v584
    %v586 = vpop.f32.mrb[0].mxu0
    %v587 = vpop.f32.mrb[0].mxu0
    %v588 = vpop.f32.mrb[0].mxu0
    %589 = vdwg.mxu0
    %v590 = vsel %vm356, %v399, -inf
    %591 = vmax.xlane.f32.xlu0 %v590
    %v592 = vpop.xlane.xlu0 %591
    %v593 = vsel %vm356, %v461, -inf
    %594 = vmax.xlane.f32.xlu0 %v593
    %v595 = vpop.xlane.xlu0 %594
    %v596 = vsel %vm356, %v523, -inf
    %597 = vmax.xlane.f32.xlu0 %v596
    %v598 = vpop.xlane.xlu0 %597
    %v599 = vsel %vm356, %v585, -inf
    %600 = vmax.xlane.f32.xlu0 %v599
    %v601 = vpop.xlane.xlu0 %600
    %v602 = vsub.f32 %v399, %v592
    %v603 = vsub.f32 %v461, %v595
    %v604 = vsub.f32 %v523, %v598
    %v605 = vsub.f32 %v585, %v601
    %v606 = vmul.f32 %v602, 1.442695
    %v607 = vpow.pop %v606
    %v608 = vmul.f32 %v603, 1.442695
    %v609 = vpow.pop %v608
    %v610 = vmul.f32 %v604, 1.442695
    %v611 = vpow.pop %v610
    %v612 = vmul.f32 %v605, 1.442695
    %v613 = vpow.pop %v612
    %v614 = vsel %vm356, %v607, 0.0
    %615 = vadd.xlane.f32.xlu0 %v614
    %v616 = vpop.xlane.xlu0 %615
    %v617 = vsel %vm356, %v609, 0.0
    %618 = vadd.xlane.f32.xlu0 %v617
    %v619 = vpop.xlane.xlu0 %618
    %v620 = vsel %vm356, %v611, 0.0
    %621 = vadd.xlane.f32.xlu0 %v620
    %v622 = vpop.xlane.xlu0 %621
    %v623 = vsel %vm356, %v613, 0.0
    %624 = vadd.xlane.f32.xlu0 %v623
    %v625 = vpop.xlane.xlu0 %624
    %v626 = vrcp.pop %v616
    %v627 = vrcp.pop %v619
    %v628 = vrcp.pop %v622
    %v629 = vrcp.pop %v625
    %v630 = vmul.f32 %v607, %v626
    %v631 = vmul.f32 %v609, %v627
    %v632 = vmul.f32 %v611, %v628
    %v633 = vmul.f32 %v613, %v629
    %v634 = vpack.c.bf16 %v318, %v318
    %v635 = vpack.c.bf16 %v321, %v321
    %v636 = vpack.c.bf16 %v326, %v326
    %v637 = vpack.c.bf16 %v329, %v329
    %v638 = vpack.c.bf16 %v630, %v630
    %v639 = vpack.c.bf16 %v631, %v631
    %v640 = vpack.c.bf16 %v632, %v632
    %v641 = vpack.c.bf16 %v633, %v633
    %v643 = vsel %vm356, %v634, 0
    %v646 = vsel %vm356, %v638, 0
    %648 = vmatprep.subr.bf16.mxu0 0
    %649 = vmatpush1.bf16.xpose.msra.mxu0 %v646
    %650 = vmatprep.subr.bf16.mxu0 0
    %651 = vmatpush1.bf16.xpose.msra.mxu0 0
    %652 = vmatprep.subr.bf16.mxu0 0
    %653 = vmatpush1.bf16.xpose.msra.mxu0 0
    %654 = vmatprep.subr.bf16.mxu0 0
    %655 = vmatpush1.bf16.xpose.msra.mxu0 0
    %656 = vmatprep.subr.bf16.mxu0 0
    %657 = vmatpush1.bf16.xpose.msra.mxu0 0
    %658 = vmatprep.subr.bf16.mxu0 0
    %659 = vmatpush1.bf16.xpose.msra.mxu0 0
    %660 = vmatprep.subr.bf16.mxu0 0
    %661 = vmatpush1.bf16.xpose.msra.mxu0 0
    %662 = vmatprep.subr.bf16.mxu0 0
    %663 = vmatpush1.bf16.xpose.msra.mxu0 0
    %664 = vmatprep.subr.bf16.mxu0 0
    %665 = vmatpush1.bf16.xpose.msra.mxu0 0
    %666 = vmatprep.subr.bf16.mxu0 0
    %667 = vmatpush1.bf16.xpose.msra.mxu0 0
    %668 = vmatprep.subr.bf16.mxu0 0
    %669 = vmatpush1.bf16.xpose.msra.mxu0 0
    %670 = vmatprep.subr.bf16.mxu0 0
    %671 = vmatpush1.bf16.xpose.msra.mxu0 0
    %672 = vmatprep.subr.bf16.mxu0 0
    %673 = vmatpush1.bf16.xpose.msra.mxu0 0
    %674 = vmatprep.subr.bf16.mxu0 0
    %675 = vmatpush1.bf16.xpose.msra.mxu0 0
    %676 = vmatprep.subr.bf16.mxu0 0
    %677 = vmatpush1.bf16.xpose.msra.mxu0 0
    %678 = vmatprep.subr.bf16.mxu0 0
    %679 = vmatpush1.bf16.xpose.msra.mxu0 0
    %680 = vmatprep.mubr.bf16.mxu0 0
    %681 = vmatmul.mubr.bf16.gmra.mrb[0].mxu0 %v643
    %v682 = vpop.f32.mrb[0].mxu0
    %v683 = vadd.f32 0.0, %v682
    %v684 = vpop.f32.mrb[0].mxu0
    %v685 = vpop.f32.mrb[0].mxu0
    %v686 = vpop.f32.mrb[0].mxu0
    %687 = vdwg.mxu0
    %v689 = vsel %vm356, %v635, 0
    %v692 = vsel %vm356, %v639, 0
    %694 = vmatprep.subr.bf16.mxu0 0
    %695 = vmatpush1.bf16.xpose.msra.mxu0 %v692
    %696 = vmatprep.subr.bf16.mxu0 0
    %697 = vmatpush1.bf16.xpose.msra.mxu0 0
    %698 = vmatprep.subr.bf16.mxu0 0
    %699 = vmatpush1.bf16.xpose.msra.mxu0 0
    %700 = vmatprep.subr.bf16.mxu0 0
    %701 = vmatpush1.bf16.xpose.msra.mxu0 0
    %702 = vmatprep.subr.bf16.mxu0 0
    %703 = vmatpush1.bf16.xpose.msra.mxu0 0
    %704 = vmatprep.subr.bf16.mxu0 0
    %705 = vmatpush1.bf16.xpose.msra.mxu0 0
    %706 = vmatprep.subr.bf16.mxu0 0
    %707 = vmatpush1.bf16.xpose.msra.mxu0 0
    %708 = vmatprep.subr.bf16.mxu0 0
    %709 = vmatpush1.bf16.xpose.msra.mxu0 0
    %710 = vmatprep.subr.bf16.mxu0 0
    %711 = vmatpush1.bf16.xpose.msra.mxu0 0
    %712 = vmatprep.subr.bf16.mxu0 0
    %713 = vmatpush1.bf16.xpose.msra.mxu0 0
    %714 = vmatprep.subr.bf16.mxu0 0
    %715 = vmatpush1.bf16.xpose.msra.mxu0 0
    %716 = vmatprep.subr.bf16.mxu0 0
    %717 = vmatpush1.bf16.xpose.msra.mxu0 0
    %718 = vmatprep.subr.bf16.mxu0 0
    %719 = vmatpush1.bf16.xpose.msra.mxu0 0
    %720 = vmatprep.subr.bf16.mxu0 0
    %721 = vmatpush1.bf16.xpose.msra.mxu0 0
    %722 = vmatprep.subr.bf16.mxu0 0
    %723 = vmatpush1.bf16.xpose.msra.mxu0 0
    %724 = vmatprep.subr.bf16.mxu0 0
    %725 = vmatpush1.bf16.xpose.msra.mxu0 0
    %726 = vmatprep.mubr.bf16.mxu0 0
    %727 = vmatmul.mubr.bf16.gmra.mrb[0].mxu0 %v689
    %v728 = vpop.f32.mrb[0].mxu0
    %v729 = vadd.f32 0.0, %v728
    %v730 = vpop.f32.mrb[0].mxu0
    %v731 = vpop.f32.mrb[0].mxu0
    %v732 = vpop.f32.mrb[0].mxu0
    %733 = vdwg.mxu0
    %v735 = vsel %vm356, %v636, 0
    %v738 = vsel %vm356, %v640, 0
    %740 = vmatprep.subr.bf16.mxu0 0
    %741 = vmatpush1.bf16.xpose.msra.mxu0 %v738
    %742 = vmatprep.subr.bf16.mxu0 0
    %743 = vmatpush1.bf16.xpose.msra.mxu0 0
    %744 = vmatprep.subr.bf16.mxu0 0
    %745 = vmatpush1.bf16.xpose.msra.mxu0 0
    %746 = vmatprep.subr.bf16.mxu0 0
    %747 = vmatpush1.bf16.xpose.msra.mxu0 0
    %748 = vmatprep.subr.bf16.mxu0 0
    %749 = vmatpush1.bf16.xpose.msra.mxu0 0
    %750 = vmatprep.subr.bf16.mxu0 0
    %751 = vmatpush1.bf16.xpose.msra.mxu0 0
    %752 = vmatprep.subr.bf16.mxu0 0
    %753 = vmatpush1.bf16.xpose.msra.mxu0 0
    %754 = vmatprep.subr.bf16.mxu0 0
    %755 = vmatpush1.bf16.xpose.msra.mxu0 0
    %756 = vmatprep.subr.bf16.mxu0 0
    %757 = vmatpush1.bf16.xpose.msra.mxu0 0
    %758 = vmatprep.subr.bf16.mxu0 0
    %759 = vmatpush1.bf16.xpose.msra.mxu0 0
    %760 = vmatprep.subr.bf16.mxu0 0
    %761 = vmatpush1.bf16.xpose.msra.mxu0 0
    %762 = vmatprep.subr.bf16.mxu0 0
    %763 = vmatpush1.bf16.xpose.msra.mxu0 0
    %764 = vmatprep.subr.bf16.mxu0 0
    %765 = vmatpush1.bf16.xpose.msra.mxu0 0
    %766 = vmatprep.subr.bf16.mxu0 0
    %767 = vmatpush1.bf16.xpose.msra.mxu0 0
    %768 = vmatprep.subr.bf16.mxu0 0
    %769 = vmatpush1.bf16.xpose.msra.mxu0 0
    %770 = vmatprep.subr.bf16.mxu0 0
    %771 = vmatpush1.bf16.xpose.msra.mxu0 0
    %772 = vmatprep.mubr.bf16.mxu0 0
    %773 = vmatmul.mubr.bf16.gmra.mrb[0].mxu0 %v735
    %v774 = vpop.f32.mrb[0].mxu0
    %v775 = vadd.f32 0.0, %v774
    %v776 = vpop.f32.mrb[0].mxu0
    %v777 = vpop.f32.mrb[0].mxu0
    %v778 = vpop.f32.mrb[0].mxu0
    %779 = vdwg.mxu0
    %v781 = vsel %vm356, %v637, 0
    %v784 = vsel %vm356, %v641, 0
    %786 = vmatprep.subr.bf16.mxu0 0
    %787 = vmatpush1.bf16.xpose.msra.mxu0 %v784
    %788 = vmatprep.subr.bf16.mxu0 0
    %789 = vmatpush1.bf16.xpose.msra.mxu0 0
    %790 = vmatprep.subr.bf16.mxu0 0
    %791 = vmatpush1.bf16.xpose.msra.mxu0 0
    %792 = vmatprep.subr.bf16.mxu0 0
    %793 = vmatpush1.bf16.xpose.msra.mxu0 0
    %794 = vmatprep.subr.bf16.mxu0 0
    %795 = vmatpush1.bf16.xpose.msra.mxu0 0
    %796 = vmatprep.subr.bf16.mxu0 0
    %797 = vmatpush1.bf16.xpose.msra.mxu0 0
    %798 = vmatprep.subr.bf16.mxu0 0
    %799 = vmatpush1.bf16.xpose.msra.mxu0 0
    %800 = vmatprep.subr.bf16.mxu0 0
    %801 = vmatpush1.bf16.xpose.msra.mxu0 0
    %802 = vmatprep.subr.bf16.mxu0 0
    %803 = vmatpush1.bf16.xpose.msra.mxu0 0
    %804 = vmatprep.subr.bf16.mxu0 0
    %805 = vmatpush1.bf16.xpose.msra.mxu0 0
    %806 = vmatprep.subr.bf16.mxu0 0
    %807 = vmatpush1.bf16.xpose.msra.mxu0 0
    %808 = vmatprep.subr.bf16.mxu0 0
    %809 = vmatpush1.bf16.xpose.msra.mxu0 0
    %810 = vmatprep.subr.bf16.mxu0 0
    %811 = vmatpush1.bf16.xpose.msra.mxu0 0
    %812 = vmatprep.subr.bf16.mxu0 0
    %813 = vmatpush1.bf16.xpose.msra.mxu0 0
    %814 = vmatprep.subr.bf16.mxu0 0
    %815 = vmatpush1.bf16.xpose.msra.mxu0 0
    %816 = vmatprep.subr.bf16.mxu0 0
    %817 = vmatpush1.bf16.xpose.msra.mxu0 0
    %818 = vmatprep.mubr.bf16.mxu0 0
    %819 = vmatmul.mubr.bf16.gmra.mrb[0].mxu0 %v781
    %v820 = vpop.f32.mrb[0].mxu0
    %v821 = vadd.f32 0.0, %v820
    %v822 = vpop.f32.mrb[0].mxu0
    %v823 = vpop.f32.mrb[0].mxu0
    %v824 = vpop.f32.mrb[0].mxu0
    %825 = vdwg.mxu0
    %v826 = vpack.c.bf16 %v729, %v683
    %v827 = vpack.c.bf16 %v821, %v775
    %v829 = vlaneseq
    %v830 = vshrl.u32 %v829, 7
    %v831 = vsub.s32 0, %v830
    %v832 = vrot.slane %v56, %v831
    %834 = vxpose.xlu0.c.b16.start [1/8] %v826, 128
    %835 = vxpose.xlu0.c.b16.cont [2/8] %v827, 128
    %836 = vxpose.xlu0.c.b16.cont [3/8] 0, 128
    %837 = vxpose.xlu0.c.b16.cont [4/8] 0, 128
    %838 = vxpose.xlu0.c.b16.cont [5/8] 0, 128
    %839 = vxpose.xlu0.c.b16.cont [6/8] 0, 128
    %840 = vxpose.xlu0.c.b16.cont [7/8] 0, 128
    %841 = vxpose.xlu0.c.b16.end [8/8] 0, 128
    %v842 = vpop.trf.xlu0
    %v843 = vpop.trf.xlu0
    %v844 = vpop.trf.xlu0
    %v845 = vpop.trf.xlu0
    %v846 = vpop.trf.xlu0
    %v847 = vpop.trf.xlu0
    %v848 = vpop.trf.xlu0
    %v849 = vpop.trf.xlu0
    %v854 = vunpack.c.l.b16 %v52
    %v855 = vunpack.c.l.b16 %v53
    %v856 = vunpack.c.l.b16 %v54
    %v857 = vunpack.c.l.b16 %v55
    %v858 = vpack.c.b16 %v855, %v854
    %v859 = vpack.c.b16 %v857, %v856
    %v863 = vsel %vm93, %v842, 0
    %865 = vmatprep.subr.bf16.mxu0 0
    %866 = vmatpush1.bf16.msra.mxu0 %v858
    %867 = vmatprep.subr.bf16.mxu0 0
    %868 = vmatpush1.bf16.msra.mxu0 %v859
    %869 = vmatprep.subr.bf16.mxu0 0
    %870 = vmatpush1.bf16.msra.mxu0 0
    %871 = vmatprep.subr.bf16.mxu0 0
    %872 = vmatpush1.bf16.msra.mxu0 0
    %873 = vmatprep.subr.bf16.mxu0 0
    %874 = vmatpush1.bf16.msra.mxu0 0
    %875 = vmatprep.subr.bf16.mxu0 0
    %876 = vmatpush1.bf16.msra.mxu0 0
    %877 = vmatprep.subr.bf16.mxu0 0
    %878 = vmatpush1.bf16.msra.mxu0 0
    %879 = vmatprep.subr.bf16.mxu0 0
    %880 = vmatpush1.bf16.msra.mxu0 0
    %881 = vmatprep.subr.bf16.mxu0 0
    %882 = vmatpush1.bf16.msra.mxu0 0
    %883 = vmatprep.subr.bf16.mxu0 0
    %884 = vmatpush1.bf16.msra.mxu0 0
    %885 = vmatprep.subr.bf16.mxu0 0
    %886 = vmatpush1.bf16.msra.mxu0 0
    %887 = vmatprep.subr.bf16.mxu0 0
    %888 = vmatpush1.bf16.msra.mxu0 0
    %889 = vmatprep.subr.bf16.mxu0 0
    %890 = vmatpush1.bf16.msra.mxu0 0
    %891 = vmatprep.subr.bf16.mxu0 0
    %892 = vmatpush1.bf16.msra.mxu0 0
    %893 = vmatprep.subr.bf16.mxu0 0
    %894 = vmatpush1.bf16.msra.mxu0 0
    %895 = vmatprep.subr.bf16.mxu0 0
    %896 = vmatpush1.bf16.msra.mxu0 0
    %897 = vmatprep.mubr.bf16.mxu0 0
    %898 = vmatmul.mubr.bf16.gmra.mrb[0].mxu0 %v863
    %v899 = vpop.f32.mrb[0].mxu0
    %v900 = vadd.f32 %v832, %v899
    %v901 = vpop.f32.mrb[0].mxu0
    %v902 = vpop.f32.mrb[0].mxu0
    %v903 = vpop.f32.mrb[0].mxu0
    %904 = vdwg.mxu0
    %905 = vst.msk [vmem:[#allocation2] sm:$0xff] %vm93, %v900
    %s906 = scalar_lea.vmem %s0, 8
    %v907 = vld [vmem:[%s906] sm:$0xff]
    %v908 = vpack.c.bf16 %v907, %v907
    %s909 = scalar_lea.vmem %s1, 8
    %v910 = vld [vmem:[%s909] sm:$0xff]
    %v911 = vpack.c.bf16 %v910, %v910
    %s912 = scalar_lea.vmem %s2, 8
    %v913 = vld [vmem:[%s912] sm:$0xff]
    %v914 = vpack.c.bf16 %v913, %v913
    %v916 = vsel %vm93, %v908, 0
    %918 = vmatprep.subr.bf16.mxu0 0
    %919 = vmatpush1.bf16.xpose.msra.mxu0 %v916
    %920 = vmatprep.subr.bf16.mxu0 0
    %921 = vmatpush1.bf16.xpose.msra.mxu0 0
    %922 = vmatprep.subr.bf16.mxu0 0
    %923 = vmatpush1.bf16.xpose.msra.mxu0 0
    %924 = vmatprep.subr.bf16.mxu0 0
    %925 = vmatpush1.bf16.xpose.msra.mxu0 0
    %926 = vmatprep.subr.bf16.mxu0 0
    %927 = vmatpush1.bf16.xpose.msra.mxu0 0
    %928 = vmatprep.subr.bf16.mxu0 0
    %929 = vmatpush1.bf16.xpose.msra.mxu0 0
    %930 = vmatprep.subr.bf16.mxu0 0
    %931 = vmatpush1.bf16.xpose.msra.mxu0 0
    %932 = vmatprep.subr.bf16.mxu0 0
    %933 = vmatpush1.bf16.xpose.msra.mxu0 0
    %934 = vmatprep.subr.bf16.mxu0 0
    %935 = vmatpush1.bf16.xpose.msra.mxu0 0
    %936 = vmatprep.subr.bf16.mxu0 0
    %937 = vmatpush1.bf16.xpose.msra.mxu0 0
    %938 = vmatprep.subr.bf16.mxu0 0
    %939 = vmatpush1.bf16.xpose.msra.mxu0 0
    %940 = vmatprep.subr.bf16.mxu0 0
    %941 = vmatpush1.bf16.xpose.msra.mxu0 0
    %942 = vmatprep.subr.bf16.mxu0 0
    %943 = vmatpush1.bf16.xpose.msra.mxu0 0
    %944 = vmatprep.subr.bf16.mxu0 0
    %945 = vmatpush1.bf16.xpose.msra.mxu0 0
    %946 = vmatprep.subr.bf16.mxu0 0
    %947 = vmatpush1.bf16.xpose.msra.mxu0 0
    %948 = vmatprep.subr.bf16.mxu0 0
    %949 = vmatpush1.bf16.xpose.msra.mxu0 0
    %950 = vmatprep.mubr.bf16.mxu0 0
    %951 = vmatmul.mubr.bf16.gmra.mrb[0].mxu0 %v95
    %v952 = vpop.f32.mrb[0].mxu0
    %v953 = vadd.f32 %v66, %v952
    %v954 = vpop.f32.mrb[0].mxu0
    %v955 = vpop.f32.mrb[0].mxu0
    %v956 = vadd.f32 %v71, %v955
    %v957 = vpop.f32.mrb[0].mxu0
    %958 = vmatprep.mubr.bf16.mxu0 0
    %959 = vmatmul.mubr.bf16.gmra.mrb[0].mxu0 %v98
    %v960 = vpop.f32.mrb[0].mxu0
    %v961 = vadd.f32 %v76, %v960
    %v962 = vpop.f32.mrb[0].mxu0
    %v963 = vpop.f32.mrb[0].mxu0
    %v964 = vadd.f32 %v81, %v963
    %v965 = vpop.f32.mrb[0].mxu0
    %966 = vdwg.mxu0
    %v967 = vmul.f32 %v953, 0.35355338
    %v968 = vmul.f32 %v956, 0.35355338
    %v969 = vmul.f32 %v961, 0.35355338
    %v970 = vmul.f32 %v964, 0.35355338
    %v972 = vsel %vm93, %v911, 0
    %974 = vmatprep.subr.bf16.mxu0 0
    %975 = vmatpush1.bf16.xpose.msra.mxu0 %v972
    %976 = vmatprep.subr.bf16.mxu0 0
    %977 = vmatpush1.bf16.xpose.msra.mxu0 0
    %978 = vmatprep.subr.bf16.mxu0 0
    %979 = vmatpush1.bf16.xpose.msra.mxu0 0
    %980 = vmatprep.subr.bf16.mxu0 0
    %981 = vmatpush1.bf16.xpose.msra.mxu0 0
    %982 = vmatprep.subr.bf16.mxu0 0
    %983 = vmatpush1.bf16.xpose.msra.mxu0 0
    %984 = vmatprep.subr.bf16.mxu0 0
    %985 = vmatpush1.bf16.xpose.msra.mxu0 0
    %986 = vmatprep.subr.bf16.mxu0 0
    %987 = vmatpush1.bf16.xpose.msra.mxu0 0
    %988 = vmatprep.subr.bf16.mxu0 0
    %989 = vmatpush1.bf16.xpose.msra.mxu0 0
    %990 = vmatprep.subr.bf16.mxu0 0
    %991 = vmatpush1.bf16.xpose.msra.mxu0 0
    %992 = vmatprep.subr.bf16.mxu0 0
    %993 = vmatpush1.bf16.xpose.msra.mxu0 0
    %994 = vmatprep.subr.bf16.mxu0 0
    %995 = vmatpush1.bf16.xpose.msra.mxu0 0
    %996 = vmatprep.subr.bf16.mxu0 0
    %997 = vmatpush1.bf16.xpose.msra.mxu0 0
    %998 = vmatprep.subr.bf16.mxu0 0
    %999 = vmatpush1.bf16.xpose.msra.mxu0 0
    %1000 = vmatprep.subr.bf16.mxu0 0
    %1001 = vmatpush1.bf16.xpose.msra.mxu0 0
    %1002 = vmatprep.subr.bf16.mxu0 0
    %1003 = vmatpush1.bf16.xpose.msra.mxu0 0
    %1004 = vmatprep.subr.bf16.mxu0 0
    %1005 = vmatpush1.bf16.xpose.msra.mxu0 0
    %1006 = vmatprep.mubr.bf16.mxu0 0
    %1007 = vmatmul.mubr.bf16.gmra.mrb[0].mxu0 %v187
    %v1008 = vpop.f32.mrb[0].mxu0
    %v1009 = vadd.f32 %v159, %v1008
    %v1010 = vpop.f32.mrb[0].mxu0
    %v1011 = vpop.f32.mrb[0].mxu0
    %v1012 = vadd.f32 %v164, %v1011
    %v1013 = vpop.f32.mrb[0].mxu0
    %1014 = vmatprep.mubr.bf16.mxu0 0
    %1015 = vmatmul.mubr.bf16.gmra.mrb[0].mxu0 %v190
    %v1016 = vpop.f32.mrb[0].mxu0
    %v1017 = vadd.f32 %v169, %v1016
    %v1018 = vpop.f32.mrb[0].mxu0
    %v1019 = vpop.f32.mrb[0].mxu0
    %v1020 = vadd.f32 %v174, %v1019
    %v1021 = vpop.f32.mrb[0].mxu0
    %1022 = vdwg.mxu0
    %v1024 = vsel %vm93, %v914, 0
    %1026 = vmatprep.subr.bf16.mxu0 0
    %1027 = vmatpush1.bf16.xpose.msra.mxu0 %v1024
    %1028 = vmatprep.subr.bf16.mxu0 0
    %1029 = vmatpush1.bf16.xpose.msra.mxu0 0
    %1030 = vmatprep.subr.bf16.mxu0 0
    %1031 = vmatpush1.bf16.xpose.msra.mxu0 0
    %1032 = vmatprep.subr.bf16.mxu0 0
    %1033 = vmatpush1.bf16.xpose.msra.mxu0 0
    %1034 = vmatprep.subr.bf16.mxu0 0
    %1035 = vmatpush1.bf16.xpose.msra.mxu0 0
    %1036 = vmatprep.subr.bf16.mxu0 0
    %1037 = vmatpush1.bf16.xpose.msra.mxu0 0
    %1038 = vmatprep.subr.bf16.mxu0 0
    %1039 = vmatpush1.bf16.xpose.msra.mxu0 0
    %1040 = vmatprep.subr.bf16.mxu0 0
    %1041 = vmatpush1.bf16.xpose.msra.mxu0 0
    %1042 = vmatprep.subr.bf16.mxu0 0
    %1043 = vmatpush1.bf16.xpose.msra.mxu0 0
    %1044 = vmatprep.subr.bf16.mxu0 0
    %1045 = vmatpush1.bf16.xpose.msra.mxu0 0
    %1046 = vmatprep.subr.bf16.mxu0 0
    %1047 = vmatpush1.bf16.xpose.msra.mxu0 0
    %1048 = vmatprep.subr.bf16.mxu0 0
    %1049 = vmatpush1.bf16.xpose.msra.mxu0 0
    %1050 = vmatprep.subr.bf16.mxu0 0
    %1051 = vmatpush1.bf16.xpose.msra.mxu0 0
    %1052 = vmatprep.subr.bf16.mxu0 0
    %1053 = vmatpush1.bf16.xpose.msra.mxu0 0
    %1054 = vmatprep.subr.bf16.mxu0 0
    %1055 = vmatpush1.bf16.xpose.msra.mxu0 0
    %1056 = vmatprep.subr.bf16.mxu0 0
    %1057 = vmatpush1.bf16.xpose.msra.mxu0 0
    %1058 = vmatprep.mubr.bf16.mxu0 0
    %1059 = vmatmul.mubr.bf16.gmra.mrb[0].mxu0 %v275
    %v1060 = vpop.f32.mrb[0].mxu0
    %v1061 = vadd.f32 %v247, %v1060
    %v1062 = vpop.f32.mrb[0].mxu0
    %v1063 = vpop.f32.mrb[0].mxu0
    %v1064 = vadd.f32 %v252, %v1063
    %v1065 = vpop.f32.mrb[0].mxu0
    %1066 = vmatprep.mubr.bf16.mxu0 0
    %1067 = vmatmul.mubr.bf16.gmra.mrb[0].mxu0 %v278
    %v1068 = vpop.f32.mrb[0].mxu0
    %v1069 = vadd.f32 %v257, %v1068
    %v1070 = vpop.f32.mrb[0].mxu0
    %v1071 = vpop.f32.mrb[0].mxu0
    %v1072 = vadd.f32 %v262, %v1071
    %v1073 = vpop.f32.mrb[0].mxu0
    %1074 = vdwg.mxu0
    %v1075 = vpack.c.bf16 %v967, %v967
    %v1076 = vpack.c.bf16 %v968, %v968
    %v1077 = vpack.c.bf16 %v969, %v969
    %v1078 = vpack.c.bf16 %v970, %v970
    %v1079 = vpack.c.bf16 %v1009, %v1009
    %v1080 = vpack.c.bf16 %v1012, %v1012
    %v1081 = vpack.c.bf16 %v1017, %v1017
    %v1082 = vpack.c.bf16 %v1020, %v1020
    %1083 = vxpose.xlu0.c.b16.start [1/8] %v1075, 128
    %1084 = vxpose.xlu0.c.b16.cont [2/8] 0, 128
    %1085 = vxpose.xlu0.c.b16.cont [3/8] 0, 128
    %1086 = vxpose.xlu0.c.b16.cont [4/8] 0, 128
    %1087 = vxpose.xlu0.c.b16.cont [5/8] 0, 128
    %1088 = vxpose.xlu0.c.b16.cont [6/8] 0, 128
    %1089 = vxpose.xlu0.c.b16.cont [7/8] 0, 128
    %1090 = vxpose.xlu0.c.b16.end [8/8] 0, 128
    %v1091 = vpop.trf.xlu0
    %v1092 = vpop.trf.xlu0
    %v1093 = vpop.trf.xlu0
    %v1094 = vpop.trf.xlu0
    %v1095 = vpop.trf.xlu0
    %v1096 = vpop.trf.xlu0
    %v1097 = vpop.trf.xlu0
    %v1098 = vpop.trf.xlu0
    %v1100 = vsel %vm356, %v1091, 0
    %v1103 = vsel %vm360, %v1079, 0
    %1105 = vmatprep.subr.bf16.mxu0 0
    %1106 = vmatpush1.bf16.msra.mxu0 %v1103
    %1107 = vmatprep.subr.bf16.mxu0 0
    %1108 = vmatpush1.bf16.msra.mxu0 0
    %1109 = vmatprep.subr.bf16.mxu0 0
    %1110 = vmatpush1.bf16.msra.mxu0 0
    %1111 = vmatprep.subr.bf16.mxu0 0
    %1112 = vmatpush1.bf16.msra.mxu0 0
    %1113 = vmatprep.subr.bf16.mxu0 0
    %1114 = vmatpush1.bf16.msra.mxu0 0
    %1115 = vmatprep.subr.bf16.mxu0 0
    %1116 = vmatpush1.bf16.msra.mxu0 0
    %1117 = vmatprep.subr.bf16.mxu0 0
    %1118 = vmatpush1.bf16.msra.mxu0 0
    %1119 = vmatprep.subr.bf16.mxu0 0
    %1120 = vmatpush1.bf16.msra.mxu0 0
    %1121 = vmatprep.subr.bf16.mxu0 0
    %1122 = vmatpush1.bf16.msra.mxu0 0
    %1123 = vmatprep.subr.bf16.mxu0 0
    %1124 = vmatpush1.bf16.msra.mxu0 0
    %1125 = vmatprep.subr.bf16.mxu0 0
    %1126 = vmatpush1.bf16.msra.mxu0 0
    %1127 = vmatprep.subr.bf16.mxu0 0
    %1128 = vmatpush1.bf16.msra.mxu0 0
    %1129 = vmatprep.subr.bf16.mxu0 0
    %1130 = vmatpush1.bf16.msra.mxu0 0
    %1131 = vmatprep.subr.bf16.mxu0 0
    %1132 = vmatpush1.bf16.msra.mxu0 0
    %1133 = vmatprep.subr.bf16.mxu0 0
    %1134 = vmatpush1.bf16.msra.mxu0 0
    %1135 = vmatprep.subr.bf16.mxu0 0
    %1136 = vmatpush1.bf16.msra.mxu0 0
    %1137 = vmatprep.mubr.bf16.mxu0 0
    %1138 = vmatmul.mubr.bf16.gmra.mrb[0].mxu0 %v1100
    %v1139 = vpop.f32.mrb[0].mxu0
    %v1140 = vadd.f32 0.0, %v1139
    %v1141 = vpop.f32.mrb[0].mxu0
    %v1142 = vpop.f32.mrb[0].mxu0
    %v1143 = vpop.f32.mrb[0].mxu0
    %1144 = vdwg.mxu0
    %1145 = vxpose.xlu0.c.b16.start [1/8] %v1076, 128
    %1146 = vxpose.xlu0.c.b16.cont [2/8] 0, 128
    %1147 = vxpose.xlu0.c.b16.cont [3/8] 0, 128
    %1148 = vxpose.xlu0.c.b16.cont [4/8] 0, 128
    %1149 = vxpose.xlu0.c.b16.cont [5/8] 0, 128
    %1150 = vxpose.xlu0.c.b16.cont [6/8] 0, 128
    %1151 = vxpose.xlu0.c.b16.cont [7/8] 0, 128
    %1152 = vxpose.xlu0.c.b16.end [8/8] 0, 128
    %v1153 = vpop.trf.xlu0
    %v1154 = vpop.trf.xlu0
    %v1155 = vpop.trf.xlu0
    %v1156 = vpop.trf.xlu0
    %v1157 = vpop.trf.xlu0
    %v1158 = vpop.trf.xlu0
    %v1159 = vpop.trf.xlu0
    %v1160 = vpop.trf.xlu0
    %v1162 = vsel %vm356, %v1153, 0
    %v1165 = vsel %vm360, %v1080, 0
    %1167 = vmatprep.subr.bf16.mxu0 0
    %1168 = vmatpush1.bf16.msra.mxu0 %v1165
    %1169 = vmatprep.subr.bf16.mxu0 0
    %1170 = vmatpush1.bf16.msra.mxu0 0
    %1171 = vmatprep.subr.bf16.mxu0 0
    %1172 = vmatpush1.bf16.msra.mxu0 0
    %1173 = vmatprep.subr.bf16.mxu0 0
    %1174 = vmatpush1.bf16.msra.mxu0 0
    %1175 = vmatprep.subr.bf16.mxu0 0
    %1176 = vmatpush1.bf16.msra.mxu0 0
    %1177 = vmatprep.subr.bf16.mxu0 0
    %1178 = vmatpush1.bf16.msra.mxu0 0
    %1179 = vmatprep.subr.bf16.mxu0 0
    %1180 = vmatpush1.bf16.msra.mxu0 0
    %1181 = vmatprep.subr.bf16.mxu0 0
    %1182 = vmatpush1.bf16.msra.mxu0 0
    %1183 = vmatprep.subr.bf16.mxu0 0
    %1184 = vmatpush1.bf16.msra.mxu0 0
    %1185 = vmatprep.subr.bf16.mxu0 0
    %1186 = vmatpush1.bf16.msra.mxu0 0
    %1187 = vmatprep.subr.bf16.mxu0 0
    %1188 = vmatpush1.bf16.msra.mxu0 0
    %1189 = vmatprep.subr.bf16.mxu0 0
    %1190 = vmatpush1.bf16.msra.mxu0 0
    %1191 = vmatprep.subr.bf16.mxu0 0
    %1192 = vmatpush1.bf16.msra.mxu0 0
    %1193 = vmatprep.subr.bf16.mxu0 0
    %1194 = vmatpush1.bf16.msra.mxu0 0
    %1195 = vmatprep.subr.bf16.mxu0 0
    %1196 = vmatpush1.bf16.msra.mxu0 0
    %1197 = vmatprep.subr.bf16.mxu0 0
    %1198 = vmatpush1.bf16.msra.mxu0 0
    %1199 = vmatprep.mubr.bf16.mxu0 0
    %1200 = vmatmul.mubr.bf16.gmra.mrb[0].mxu0 %v1162
    %v1201 = vpop.f32.mrb[0].mxu0
    %v1202 = vadd.f32 0.0, %v1201
    %v1203 = vpop.f32.mrb[0].mxu0
    %v1204 = vpop.f32.mrb[0].mxu0
    %v1205 = vpop.f32.mrb[0].mxu0
    %1206 = vdwg.mxu0
    %1207 = vxpose.xlu0.c.b16.start [1/8] %v1077, 128
    %1208 = vxpose.xlu0.c.b16.cont [2/8] 0, 128
    %1209 = vxpose.xlu0.c.b16.cont [3/8] 0, 128
    %1210 = vxpose.xlu0.c.b16.cont [4/8] 0, 128
    %1211 = vxpose.xlu0.c.b16.cont [5/8] 0, 128
    %1212 = vxpose.xlu0.c.b16.cont [6/8] 0, 128
    %1213 = vxpose.xlu0.c.b16.cont [7/8] 0, 128
    %1214 = vxpose.xlu0.c.b16.end [8/8] 0, 128
    %v1215 = vpop.trf.xlu0
    %v1216 = vpop.trf.xlu0
    %v1217 = vpop.trf.xlu0
    %v1218 = vpop.trf.xlu0
    %v1219 = vpop.trf.xlu0
    %v1220 = vpop.trf.xlu0
    %v1221 = vpop.trf.xlu0
    %v1222 = vpop.trf.xlu0
    %v1224 = vsel %vm356, %v1215, 0
    %v1227 = vsel %vm360, %v1081, 0
    %1229 = vmatprep.subr.bf16.mxu0 0
    %1230 = vmatpush1.bf16.msra.mxu0 %v1227
    %1231 = vmatprep.subr.bf16.mxu0 0
    %1232 = vmatpush1.bf16.msra.mxu0 0
    %1233 = vmatprep.subr.bf16.mxu0 0
    %1234 = vmatpush1.bf16.msra.mxu0 0
    %1235 = vmatprep.subr.bf16.mxu0 0
    %1236 = vmatpush1.bf16.msra.mxu0 0
    %1237 = vmatprep.subr.bf16.mxu0 0
    %1238 = vmatpush1.bf16.msra.mxu0 0
    %1239 = vmatprep.subr.bf16.mxu0 0
    %1240 = vmatpush1.bf16.msra.mxu0 0
    %1241 = vmatprep.subr.bf16.mxu0 0
    %1242 = vmatpush1.bf16.msra.mxu0 0
    %1243 = vmatprep.subr.bf16.mxu0 0
    %1244 = vmatpush1.bf16.msra.mxu0 0
    %1245 = vmatprep.subr.bf16.mxu0 0
    %1246 = vmatpush1.bf16.msra.mxu0 0
    %1247 = vmatprep.subr.bf16.mxu0 0
    %1248 = vmatpush1.bf16.msra.mxu0 0
    %1249 = vmatprep.subr.bf16.mxu0 0
    %1250 = vmatpush1.bf16.msra.mxu0 0
    %1251 = vmatprep.subr.bf16.mxu0 0
    %1252 = vmatpush1.bf16.msra.mxu0 0
    %1253 = vmatprep.subr.bf16.mxu0 0
    %1254 = vmatpush1.bf16.msra.mxu0 0
    %1255 = vmatprep.subr.bf16.mxu0 0
    %1256 = vmatpush1.bf16.msra.mxu0 0
    %1257 = vmatprep.subr.bf16.mxu0 0
    %1258 = vmatpush1.bf16.msra.mxu0 0
    %1259 = vmatprep.subr.bf16.mxu0 0
    %1260 = vmatpush1.bf16.msra.mxu0 0
    %1261 = vmatprep.mubr.bf16.mxu0 0
    %1262 = vmatmul.mubr.bf16.gmra.mrb[0].mxu0 %v1224
    %v1263 = vpop.f32.mrb[0].mxu0
    %v1264 = vadd.f32 0.0, %v1263
    %v1265 = vpop.f32.mrb[0].mxu0
    %v1266 = vpop.f32.mrb[0].mxu0
    %v1267 = vpop.f32.mrb[0].mxu0
    %1268 = vdwg.mxu0
    %1269 = vxpose.xlu0.c.b16.start [1/8] %v1078, 128
    %1270 = vxpose.xlu0.c.b16.cont [2/8] 0, 128
    %1271 = vxpose.xlu0.c.b16.cont [3/8] 0, 128
    %1272 = vxpose.xlu0.c.b16.cont [4/8] 0, 128
    %1273 = vxpose.xlu0.c.b16.cont [5/8] 0, 128
    %1274 = vxpose.xlu0.c.b16.cont [6/8] 0, 128
    %1275 = vxpose.xlu0.c.b16.cont [7/8] 0, 128
    %1276 = vxpose.xlu0.c.b16.end [8/8] 0, 128
    %v1277 = vpop.trf.xlu0
    %v1278 = vpop.trf.xlu0
    %v1279 = vpop.trf.xlu0
    %v1280 = vpop.trf.xlu0
    %v1281 = vpop.trf.xlu0
    %v1282 = vpop.trf.xlu0
    %v1283 = vpop.trf.xlu0
    %v1284 = vpop.trf.xlu0
    %v1286 = vsel %vm356, %v1277, 0
    %v1289 = vsel %vm360, %v1082, 0
    %1291 = vmatprep.subr.bf16.mxu0 0
    %1292 = vmatpush1.bf16.msra.mxu0 %v1289
    %1293 = vmatprep.subr.bf16.mxu0 0
    %1294 = vmatpush1.bf16.msra.mxu0 0
    %1295 = vmatprep.subr.bf16.mxu0 0
    %1296 = vmatpush1.bf16.msra.mxu0 0
    %1297 = vmatprep.subr.bf16.mxu0 0
    %1298 = vmatpush1.bf16.msra.mxu0 0
    %1299 = vmatprep.subr.bf16.mxu0 0
    %1300 = vmatpush1.bf16.msra.mxu0 0
    %1301 = vmatprep.subr.bf16.mxu0 0
    %1302 = vmatpush1.bf16.msra.mxu0 0
    %1303 = vmatprep.subr.bf16.mxu0 0
    %1304 = vmatpush1.bf16.msra.mxu0 0
    %1305 = vmatprep.subr.bf16.mxu0 0
    %1306 = vmatpush1.bf16.msra.mxu0 0
    %1307 = vmatprep.subr.bf16.mxu0 0
    %1308 = vmatpush1.bf16.msra.mxu0 0
    %1309 = vmatprep.subr.bf16.mxu0 0
    %1310 = vmatpush1.bf16.msra.mxu0 0
    %1311 = vmatprep.subr.bf16.mxu0 0
    %1312 = vmatpush1.bf16.msra.mxu0 0
    %1313 = vmatprep.subr.bf16.mxu0 0
    %1314 = vmatpush1.bf16.msra.mxu0 0
    %1315 = vmatprep.subr.bf16.mxu0 0
    %1316 = vmatpush1.bf16.msra.mxu0 0
    %1317 = vmatprep.subr.bf16.mxu0 0
    %1318 = vmatpush1.bf16.msra.mxu0 0
    %1319 = vmatprep.subr.bf16.mxu0 0
    %1320 = vmatpush1.bf16.msra.mxu0 0
    %1321 = vmatprep.subr.bf16.mxu0 0
    %1322 = vmatpush1.bf16.msra.mxu0 0
    %1323 = vmatprep.mubr.bf16.mxu0 0
    %1324 = vmatmul.mubr.bf16.gmra.mrb[0].mxu0 %v1286
    %v1325 = vpop.f32.mrb[0].mxu0
    %v1326 = vadd.f32 0.0, %v1325
    %v1327 = vpop.f32.mrb[0].mxu0
    %v1328 = vpop.f32.mrb[0].mxu0
    %v1329 = vpop.f32.mrb[0].mxu0
    %1330 = vdwg.mxu0
    %v1331 = vsel %vm356, %v1140, -inf
    %1332 = vmax.xlane.f32.xlu0 %v1331
    %v1333 = vpop.xlane.xlu0 %1332
    %v1334 = vsel %vm356, %v1202, -inf
    %1335 = vmax.xlane.f32.xlu0 %v1334
    %v1336 = vpop.xlane.xlu0 %1335
    %v1337 = vsel %vm356, %v1264, -inf
    %1338 = vmax.xlane.f32.xlu0 %v1337
    %v1339 = vpop.xlane.xlu0 %1338
    %v1340 = vsel %vm356, %v1326, -inf
    %1341 = vmax.xlane.f32.xlu0 %v1340
    %v1342 = vpop.xlane.xlu0 %1341
    %v1343 = vsub.f32 %v1140, %v1333
    %v1344 = vsub.f32 %v1202, %v1336
    %v1345 = vsub.f32 %v1264, %v1339
    %v1346 = vsub.f32 %v1326, %v1342
    %v1347 = vmul.f32 %v1343, 1.442695
    %v1348 = vpow.pop %v1347
    %v1349 = vmul.f32 %v1344, 1.442695
    %v1350 = vpow.pop %v1349
    %v1351 = vmul.f32 %v1345, 1.442695
    %v1352 = vpow.pop %v1351
    %v1353 = vmul.f32 %v1346, 1.442695
    %v1354 = vpow.pop %v1353
    %v1355 = vsel %vm356, %v1348, 0.0
    %1356 = vadd.xlane.f32.xlu0 %v1355
    %v1357 = vpop.xlane.xlu0 %1356
    %v1358 = vsel %vm356, %v1350, 0.0
    %1359 = vadd.xlane.f32.xlu0 %v1358
    %v1360 = vpop.xlane.xlu0 %1359
    %v1361 = vsel %vm356, %v1352, 0.0
    %1362 = vadd.xlane.f32.xlu0 %v1361
    %v1363 = vpop.xlane.xlu0 %1362
    %v1364 = vsel %vm356, %v1354, 0.0
    %1365 = vadd.xlane.f32.xlu0 %v1364
    %v1366 = vpop.xlane.xlu0 %1365
    %v1367 = vrcp.pop %v1357
    %v1368 = vrcp.pop %v1360
    %v1369 = vrcp.pop %v1363
    %v1370 = vrcp.pop %v1366
    %v1371 = vmul.f32 %v1348, %v1367
    %v1372 = vmul.f32 %v1350, %v1368
    %v1373 = vmul.f32 %v1352, %v1369
    %v1374 = vmul.f32 %v1354, %v1370
    %v1375 = vpack.c.bf16 %v1061, %v1061
    %v1376 = vpack.c.bf16 %v1064, %v1064
    %v1377 = vpack.c.bf16 %v1069, %v1069
    %v1378 = vpack.c.bf16 %v1072, %v1072
    %v1379 = vpack.c.bf16 %v1371, %v1371
    %v1380 = vpack.c.bf16 %v1372, %v1372
    %v1381 = vpack.c.bf16 %v1373, %v1373
    %v1382 = vpack.c.bf16 %v1374, %v1374
    %v1384 = vsel %vm356, %v1375, 0
    %v1387 = vsel %vm356, %v1379, 0
    %1389 = vmatprep.subr.bf16.mxu0 0
    %1390 = vmatpush1.bf16.xpose.msra.mxu0 %v1387
    %1391 = vmatprep.subr.bf16.mxu0 0
    %1392 = vmatpush1.bf16.xpose.msra.mxu0 0
    %1393 = vmatprep.subr.bf16.mxu0 0
    %1394 = vmatpush1.bf16.xpose.msra.mxu0 0
    %1395 = vmatprep.subr.bf16.mxu0 0
    %1396 = vmatpush1.bf16.xpose.msra.mxu0 0
    %1397 = vmatprep.subr.bf16.mxu0 0
    %1398 = vmatpush1.bf16.xpose.msra.mxu0 0
    %1399 = vmatprep.subr.bf16.mxu0 0
    %1400 = vmatpush1.bf16.xpose.msra.mxu0 0
    %1401 = vmatprep.subr.bf16.mxu0 0
    %1402 = vmatpush1.bf16.xpose.msra.mxu0 0
    %1403 = vmatprep.subr.bf16.mxu0 0
    %1404 = vmatpush1.bf16.xpose.msra.mxu0 0
    %1405 = vmatprep.subr.bf16.mxu0 0
    %1406 = vmatpush1.bf16.xpose.msra.mxu0 0
    %1407 = vmatprep.subr.bf16.mxu0 0
    %1408 = vmatpush1.bf16.xpose.msra.mxu0 0
    %1409 = vmatprep.subr.bf16.mxu0 0
    %1410 = vmatpush1.bf16.xpose.msra.mxu0 0
    %1411 = vmatprep.subr.bf16.mxu0 0
    %1412 = vmatpush1.bf16.xpose.msra.mxu0 0
    %1413 = vmatprep.subr.bf16.mxu0 0
    %1414 = vmatpush1.bf16.xpose.msra.mxu0 0
    %1415 = vmatprep.subr.bf16.mxu0 0
    %1416 = vmatpush1.bf16.xpose.msra.mxu0 0
    %1417 = vmatprep.subr.bf16.mxu0 0
    %1418 = vmatpush1.bf16.xpose.msra.mxu0 0
    %1419 = vmatprep.subr.bf16.mxu0 0
    %1420 = vmatpush1.bf16.xpose.msra.mxu0 0
    %1421 = vmatprep.mubr.bf16.mxu0 0
    %1422 = vmatmul.mubr.bf16.gmra.mrb[0].mxu0 %v1384
    %v1423 = vpop.f32.mrb[0].mxu0
    %v1424 = vadd.f32 0.0, %v1423
    %v1425 = vpop.f32.mrb[0].mxu0
    %v1426 = vpop.f32.mrb[0].mxu0
    %v1427 = vpop.f32.mrb[0].mxu0
    %1428 = vdwg.mxu0
    %v1430 = vsel %vm356, %v1376, 0
    %v1433 = vsel %vm356, %v1380, 0
    %1435 = vmatprep.subr.bf16.mxu0 0
    %1436 = vmatpush1.bf16.xpose.msra.mxu0 %v1433
    %1437 = vmatprep.subr.bf16.mxu0 0
    %1438 = vmatpush1.bf16.xpose.msra.mxu0 0
    %1439 = vmatprep.subr.bf16.mxu0 0
    %1440 = vmatpush1.bf16.xpose.msra.mxu0 0
    %1441 = vmatprep.subr.bf16.mxu0 0
    %1442 = vmatpush1.bf16.xpose.msra.mxu0 0
    %1443 = vmatprep.subr.bf16.mxu0 0
    %1444 = vmatpush1.bf16.xpose.msra.mxu0 0
    %1445 = vmatprep.subr.bf16.mxu0 0
    %1446 = vmatpush1.bf16.xpose.msra.mxu0 0
    %1447 = vmatprep.subr.bf16.mxu0 0
    %1448 = vmatpush1.bf16.xpose.msra.mxu0 0
    %1449 = vmatprep.subr.bf16.mxu0 0
    %1450 = vmatpush1.bf16.xpose.msra.mxu0 0
    %1451 = vmatprep.subr.bf16.mxu0 0
    %1452 = vmatpush1.bf16.xpose.msra.mxu0 0
    %1453 = vmatprep.subr.bf16.mxu0 0
    %1454 = vmatpush1.bf16.xpose.msra.mxu0 0
    %1455 = vmatprep.subr.bf16.mxu0 0
    %1456 = vmatpush1.bf16.xpose.msra.mxu0 0
    %1457 = vmatprep.subr.bf16.mxu0 0
    %1458 = vmatpush1.bf16.xpose.msra.mxu0 0
    %1459 = vmatprep.subr.bf16.mxu0 0
    %1460 = vmatpush1.bf16.xpose.msra.mxu0 0
    %1461 = vmatprep.subr.bf16.mxu0 0
    %1462 = vmatpush1.bf16.xpose.msra.mxu0 0
    %1463 = vmatprep.subr.bf16.mxu0 0
    %1464 = vmatpush1.bf16.xpose.msra.mxu0 0
    %1465 = vmatprep.subr.bf16.mxu0 0
    %1466 = vmatpush1.bf16.xpose.msra.mxu0 0
    %1467 = vmatprep.mubr.bf16.mxu0 0
    %1468 = vmatmul.mubr.bf16.gmra.mrb[0].mxu0 %v1430
    %v1469 = vpop.f32.mrb[0].mxu0
    %v1470 = vadd.f32 0.0, %v1469
    %v1471 = vpop.f32.mrb[0].mxu0
    %v1472 = vpop.f32.mrb[0].mxu0
    %v1473 = vpop.f32.mrb[0].mxu0
    %1474 = vdwg.mxu0
    %v1476 = vsel %vm356, %v1377, 0
    %v1479 = vsel %vm356, %v1381, 0
    %1481 = vmatprep.subr.bf16.mxu0 0
    %1482 = vmatpush1.bf16.xpose.msra.mxu0 %v1479
    %1483 = vmatprep.subr.bf16.mxu0 0
    %1484 = vmatpush1.bf16.xpose.msra.mxu0 0
    %1485 = vmatprep.subr.bf16.mxu0 0
    %1486 = vmatpush1.bf16.xpose.msra.mxu0 0
    %1487 = vmatprep.subr.bf16.mxu0 0
    %1488 = vmatpush1.bf16.xpose.msra.mxu0 0
    %1489 = vmatprep.subr.bf16.mxu0 0
    %1490 = vmatpush1.bf16.xpose.msra.mxu0 0
    %1491 = vmatprep.subr.bf16.mxu0 0
    %1492 = vmatpush1.bf16.xpose.msra.mxu0 0
    %1493 = vmatprep.subr.bf16.mxu0 0
    %1494 = vmatpush1.bf16.xpose.msra.mxu0 0
    %1495 = vmatprep.subr.bf16.mxu0 0
    %1496 = vmatpush1.bf16.xpose.msra.mxu0 0
    %1497 = vmatprep.subr.bf16.mxu0 0
    %1498 = vmatpush1.bf16.xpose.msra.mxu0 0
    %1499 = vmatprep.subr.bf16.mxu0 0
    %1500 = vmatpush1.bf16.xpose.msra.mxu0 0
    %1501 = vmatprep.subr.bf16.mxu0 0
    %1502 = vmatpush1.bf16.xpose.msra.mxu0 0
    %1503 = vmatprep.subr.bf16.mxu0 0
    %1504 = vmatpush1.bf16.xpose.msra.mxu0 0
    %1505 = vmatprep.subr.bf16.mxu0 0
    %1506 = vmatpush1.bf16.xpose.msra.mxu0 0
    %1507 = vmatprep.subr.bf16.mxu0 0
    %1508 = vmatpush1.bf16.xpose.msra.mxu0 0
    %1509 = vmatprep.subr.bf16.mxu0 0
    %1510 = vmatpush1.bf16.xpose.msra.mxu0 0
    %1511 = vmatprep.subr.bf16.mxu0 0
    %1512 = vmatpush1.bf16.xpose.msra.mxu0 0
    %1513 = vmatprep.mubr.bf16.mxu0 0
    %1514 = vmatmul.mubr.bf16.gmra.mrb[0].mxu0 %v1476
    %v1515 = vpop.f32.mrb[0].mxu0
    %v1516 = vadd.f32 0.0, %v1515
    %v1517 = vpop.f32.mrb[0].mxu0
    %v1518 = vpop.f32.mrb[0].mxu0
    %v1519 = vpop.f32.mrb[0].mxu0
    %1520 = vdwg.mxu0
    %v1522 = vsel %vm356, %v1378, 0
    %v1525 = vsel %vm356, %v1382, 0
    %1527 = vmatprep.subr.bf16.mxu0 0
    %1528 = vmatpush1.bf16.xpose.msra.mxu0 %v1525
    %1529 = vmatprep.subr.bf16.mxu0 0
    %1530 = vmatpush1.bf16.xpose.msra.mxu0 0
    %1531 = vmatprep.subr.bf16.mxu0 0
    %1532 = vmatpush1.bf16.xpose.msra.mxu0 0
    %1533 = vmatprep.subr.bf16.mxu0 0
    %1534 = vmatpush1.bf16.xpose.msra.mxu0 0
    %1535 = vmatprep.subr.bf16.mxu0 0
    %1536 = vmatpush1.bf16.xpose.msra.mxu0 0
    %1537 = vmatprep.subr.bf16.mxu0 0
    %1538 = vmatpush1.bf16.xpose.msra.mxu0 0
    %1539 = vmatprep.subr.bf16.mxu0 0
    %1540 = vmatpush1.bf16.xpose.msra.mxu0 0
    %1541 = vmatprep.subr.bf16.mxu0 0
    %1542 = vmatpush1.bf16.xpose.msra.mxu0 0
    %1543 = vmatprep.subr.bf16.mxu0 0
    %1544 = vmatpush1.bf16.xpose.msra.mxu0 0
    %1545 = vmatprep.subr.bf16.mxu0 0
    %1546 = vmatpush1.bf16.xpose.msra.mxu0 0
    %1547 = vmatprep.subr.bf16.mxu0 0
    %1548 = vmatpush1.bf16.xpose.msra.mxu0 0
    %1549 = vmatprep.subr.bf16.mxu0 0
    %1550 = vmatpush1.bf16.xpose.msra.mxu0 0
    %1551 = vmatprep.subr.bf16.mxu0 0
    %1552 = vmatpush1.bf16.xpose.msra.mxu0 0
    %1553 = vmatprep.subr.bf16.mxu0 0
    %1554 = vmatpush1.bf16.xpose.msra.mxu0 0
    %1555 = vmatprep.subr.bf16.mxu0 0
    %1556 = vmatpush1.bf16.xpose.msra.mxu0 0
    %1557 = vmatprep.subr.bf16.mxu0 0
    %1558 = vmatpush1.bf16.xpose.msra.mxu0 0
    %1559 = vmatprep.mubr.bf16.mxu0 0
    %1560 = vmatmul.mubr.bf16.gmra.mrb[0].mxu0 %v1522
    %v1561 = vpop.f32.mrb[0].mxu0
    %v1562 = vadd.f32 0.0, %v1561
    %v1563 = vpop.f32.mrb[0].mxu0
    %v1564 = vpop.f32.mrb[0].mxu0
    %v1565 = vpop.f32.mrb[0].mxu0
    %1566 = vdwg.mxu0
    %v1567 = vpack.c.bf16 %v1470, %v1424
    %v1568 = vpack.c.bf16 %v1562, %v1516
    %1569 = vxpose.xlu0.c.b16.start [1/8] %v1567, 128
    %1570 = vxpose.xlu0.c.b16.cont [2/8] %v1568, 128
    %1571 = vxpose.xlu0.c.b16.cont [3/8] 0, 128
    %1572 = vxpose.xlu0.c.b16.cont [4/8] 0, 128
    %1573 = vxpose.xlu0.c.b16.cont [5/8] 0, 128
    %1574 = vxpose.xlu0.c.b16.cont [6/8] 0, 128
    %1575 = vxpose.xlu0.c.b16.cont [7/8] 0, 128
    %1576 = vxpose.xlu0.c.b16.end [8/8] 0, 128
    %v1577 = vpop.trf.xlu0
    %v1578 = vpop.trf.xlu0
    %v1579 = vpop.trf.xlu0
    %v1580 = vpop.trf.xlu0
    %v1581 = vpop.trf.xlu0
    %v1582 = vpop.trf.xlu0
    %v1583 = vpop.trf.xlu0
    %v1584 = vpop.trf.xlu0
    %v1586 = vsel %vm93, %v1577, 0
    %1588 = vmatprep.subr.bf16.mxu0 0
    %1589 = vmatpush1.bf16.msra.mxu0 %v858
    %1590 = vmatprep.subr.bf16.mxu0 0
    %1591 = vmatpush1.bf16.msra.mxu0 %v859
    %1592 = vmatprep.subr.bf16.mxu0 0
    %1593 = vmatpush1.bf16.msra.mxu0 0
    %1594 = vmatprep.subr.bf16.mxu0 0
    %1595 = vmatpush1.bf16.msra.mxu0 0
    %1596 = vmatprep.subr.bf16.mxu0 0
    %1597 = vmatpush1.bf16.msra.mxu0 0
    %1598 = vmatprep.subr.bf16.mxu0 0
    %1599 = vmatpush1.bf16.msra.mxu0 0
    %1600 = vmatprep.subr.bf16.mxu0 0
    %1601 = vmatpush1.bf16.msra.mxu0 0
    %1602 = vmatprep.subr.bf16.mxu0 0
    %1603 = vmatpush1.bf16.msra.mxu0 0
    %1604 = vmatprep.subr.bf16.mxu0 0
    %1605 = vmatpush1.bf16.msra.mxu0 0
    %1606 = vmatprep.subr.bf16.mxu0 0
    %1607 = vmatpush1.bf16.msra.mxu0 0
    %1608 = vmatprep.subr.bf16.mxu0 0
    %1609 = vmatpush1.bf16.msra.mxu0 0
    %1610 = vmatprep.subr.bf16.mxu0 0
    %1611 = vmatpush1.bf16.msra.mxu0 0
    %1612 = vmatprep.subr.bf16.mxu0 0
    %1613 = vmatpush1.bf16.msra.mxu0 0
    %1614 = vmatprep.subr.bf16.mxu0 0
    %1615 = vmatpush1.bf16.msra.mxu0 0
    %1616 = vmatprep.subr.bf16.mxu0 0
    %1617 = vmatpush1.bf16.msra.mxu0 0
    %1618 = vmatprep.subr.bf16.mxu0 0
    %1619 = vmatpush1.bf16.msra.mxu0 0
    %1620 = vmatprep.mubr.bf16.mxu0 0
    %1621 = vmatmul.mubr.bf16.gmra.mrb[0].mxu0 %v1586
    %v1622 = vpop.f32.mrb[0].mxu0
    %v1623 = vadd.f32 %v832, %v1622
    %v1624 = vpop.f32.mrb[0].mxu0
    %v1625 = vpop.f32.mrb[0].mxu0
    %v1626 = vpop.f32.mrb[0].mxu0
    %1627 = vdwg.mxu0
    %s1628 = scalar_lea.vmem [#allocation2], 8
    %1629 = vst.msk [vmem:[%s1628] sm:$0xff] %vm93, %v1623
    // Predicated region
    $region30: #{_mha_pallas.1} parent=1 // pred_check
      _
    $region31: #{_mha_pallas.1} parent=1 // pred_check_branch
      %1631 = sbr.rel (0) target = $region33
    $region32: #{_mha_pallas.1} parent=1 // pred_region
      %s1633 = ssub.s32 256, 256
      %1634 = vsyncadd [#allocation3], %s1633
      %s1635 = sshll.u32 [#allocation2], 4
      %s1636 = int_to_ptr.vmem [resolvable:$true] %s1635
      %1641 = dma.vmem_to_hbm [thread:$0]  %s1636, 256, %s7, [#allocation3], 128, 128, 8
    $region33: #{_mha_pallas.1} parent=1 // pred_fallthru
      _
    // Predicated region
    $region34: #{_mha_pallas.1} parent=1 // pred_check
      _
    $region35: #{_mha_pallas.1} parent=1 // pred_check_branch
      %1643 = sbr.rel (0) target = $region37
    $region36: #{_mha_pallas.1} parent=1 // pred_region
      %1644 = dma.done [#allocation3], 256
    $region37: #{_mha_pallas.1} parent=1 // pred_fallthru
      _
    %1645 = vsyncpa [#allocation3], 1

</llo_original>
